<compile_context>
chip_gen: v7x
topology: tpu7x:2x2x1
jax: 0.10.0
libtpu: 0.0.40
codegen_flags: <defaults>
</compile_context>

<pallas_src>
import jax
import jax.numpy as jnp
from jax import lax
from jax.experimental import pallas as pl
from jax.experimental.pallas import tpu as pltpu


# ---------------------------------------------------------------------------
# Feature probe: single-buffered grid-invariant inputs (halves weight VMEM,
# mainly matters on v7x's 64 MiB VMEM).  Falls back to default double
# buffering if this Pallas build rejects pipeline_mode=pl.Buffered(1).
# ---------------------------------------------------------------------------
def _probe_single_buffer_weights():
    try:
        mode = pl.Buffered(1)

        def k(x_ref, o_ref):
            o_ref[...] = x_ref[...] + 1.0

        fn = pl.pallas_call(
            k,
            out_shape=jax.ShapeDtypeStruct((8, 128), jnp.float32),
            grid=(1,),
            in_specs=[pl.BlockSpec((8, 128), lambda i: (0, 0),
                                   pipeline_mode=mode)],
            out_specs=pl.BlockSpec((8, 128), lambda i: (0, 0)),
        )
        jax.block_until_ready(fn(jnp.zeros((8, 128), jnp.float32)))
        return mode
    except Exception:  # any failure -> keep the default pipelining
        return None


_WEIGHT_PIPELINE_MODE = _probe_single_buffer_weights()


def _weight_spec(block_shape, index_map):
    """BlockSpec for a grid-invariant weight tensor (single-buffered if possible)."""
    if _WEIGHT_PIPELINE_MODE is not None:
        return pl.BlockSpec(block_shape, index_map,
                            pipeline_mode=_WEIGHT_PIPELINE_MODE)
    return pl.BlockSpec(block_shape, index_map)


# ---------------------------------------------------------------------------
# Fused kernel: 3x3 conv (+folded BN) -> LeakyReLU -> 1x1 conv -> [YOLO decode]
# One program handles one (batch element, row strip).
# ---------------------------------------------------------------------------
def _make_head_kernel(H, W, TH, Cin, Cmid, Cpad, C5, anchors, stride, decode):
    del H  # only W / TH are needed inside the body

    def kernel(xpad_ref, w1_ref, b1_ref, w2_ref, b2_ref, o_ref):
        # xpad_ref : (H+2, W+2, Cin)  bf16, zero-padded NHWC input (full image)
        # w1_ref   : (9*Cin, Cmid)    bf16, 3x3 weights, tap-major, BN scale folded
        # b1_ref   : (1, Cmid)        f32,  folded BN bias
        # w2_ref   : (Cmid, Cpad)     bf16, 1x1 weights, zero-padded to Cpad lanes
        # b2_ref   : (1, Cpad)        f32,  1x1 bias, zero-padded
        # o_ref    : (TH, W, Cpad)    f32,  output row strip
        row0 = pl.multiple_of(pl.program_id(1) * TH, TH)

        # --- im2col: one (TH*W, 9*Cin) block so the 3x3 conv is a single MXU dot.
        # (slice in f32 so the 1-px halo shifts are plain relayouts, then cast)
        win = xpad_ref[pl.ds(row0, TH + 2), :, :].astype(jnp.float32)
        taps = []
        for dy in range(3):
            for dx in range(3):
                taps.append(win[dy:dy + TH, dx:dx + W, :])
        xcol = jnp.concatenate(taps, axis=-1)          # (TH, W, 9*Cin)
        xcol = xcol.reshape(TH * W, 9 * Cin).astype(jnp.bfloat16)

        # --- conv3x3 (+ BN scale folded into w1), f32 accumulation on the MXU
        mid = jnp.dot(xcol, w1_ref[...], preferred_element_type=jnp.float32)
        mid = mid + b1_ref[...]                        # folded BatchNorm bias
        mid = jnp.where(mid >= 0.0, mid, 0.01 * mid)   # LeakyReLU(0.01), f32 VPU

        # --- 1x1 conv to (lane-dense) padded output channels
        out = jnp.dot(mid.astype(jnp.bfloat16), w2_ref[...],
                      preferred_element_type=jnp.float32) + b2_ref[...]
        out = out.reshape(TH, W, Cpad)

        if decode:
            sig = jax.nn.sigmoid(out)                  # single full EUP pass
            # exp(x) = sig / (1 - sig): reuse the sigmoid; approx recip is ~free.
            ex = sig * pl.reciprocal(1.0 - sig, approx=True)

            # Compile-time lane masks / per-lane anchor sizes.  Head channel
            # c = a*C5 + cc  (a = anchor index, cc = field index).
            lane = lax.broadcasted_iota(jnp.int32, (1, 1, Cpad), 2)
            is_xy = lane < 0
            is_wh = lane < 0
            whm = jnp.zeros((1, 1, Cpad), jnp.float32)
            for a, (aw, ah) in enumerate(anchors):
                c0 = a * C5
                is_xy = is_xy | (lane == c0) | (lane == c0 + 1)
                is_wh = is_wh | (lane == c0 + 2) | (lane == c0 + 3)
                # stride cancels: exp * (anchor/stride) * stride == exp * anchor
                whm = whm + jnp.where(lane == c0 + 2, float(aw), 0.0)
                whm = whm + jnp.where(lane == c0 + 3, float(ah), 0.0)

            # Reproduces the upstream bug: grid_y == grid_x (both index the W
            # axis), which also makes the decode independent of the row strip.
            gx = lax.broadcasted_iota(jnp.float32, (1, W, Cpad), 1)
            out = jnp.where(is_xy, (sig + gx) * float(stride),
                            jnp.where(is_wh, ex * whm, sig))

        o_ref[...] = out

    return kernel


# ---------------------------------------------------------------------------
# Wrapper (glue: parameter prep, layout conversion at the edges)
# ---------------------------------------------------------------------------
class YOLOLayerPallas:
    def __init__(self, in_channels, anchors, num_classes, image_size=416, seed=0):
        self.in_channels = in_channels
        self.num_anchors = len(anchors)
        self.num_classes = num_classes
        self.anchors = [(float(w), float(h)) for (w, h) in anchors]
        self.image_size = image_size
        self.cmid = in_channels * 2
        self.cout = self.num_anchors * (5 + num_classes)
        self.cpad = ((self.cout + 127) // 128) * 128   # lane-dense output width

        ks = jax.random.split(jax.random.PRNGKey(seed), 6)
        # Conv2d(in, 2*in, 3, padding=1, bias=False) -- weight (O, I, kH, kW)
        self.w1 = 0.1 * jax.random.normal(ks[0], (self.cmid, in_channels, 3, 3),
                                          jnp.float32)
        # BatchNorm2d(2*in) -- inference statistics
        self.bn_gamma = 1.0 + 0.1 * jax.random.normal(ks[1], (self.cmid,), jnp.float32)
        self.bn_beta = 0.1 * jax.random.normal(ks[2], (self.cmid,), jnp.float32)
        self.bn_mean = 0.1 * jax.random.normal(ks[3], (self.cmid,), jnp.float32)
        self.bn_var = jnp.abs(1.0 + 0.1 * jax.random.normal(ks[4], (self.cmid,),
                                                            jnp.float32))
        # Conv2d(2*in, cout, 1)
        self.w2 = 0.1 * jax.random.normal(ks[5], (self.cout, self.cmid, 1, 1),
                                          jnp.float32)
        self.b2 = 0.01 * jnp.arange(self.cout, dtype=jnp.float32)

        # ---- kernel-ready parameters (prepared once) --------------------------
        scale = self.bn_gamma / jnp.sqrt(self.bn_var + 1e-5)
        # (O, I, kH, kW) -> (kH, kW, I, O) -> (9*I, O); fold BN scale; cast bf16
        w1_taps = jnp.transpose(self.w1, (2, 3, 1, 0)).reshape(9 * in_channels,
                                                               self.cmid)
        self.w1_k = (w1_taps * scale[None, :]).astype(jnp.bfloat16)
        self.b1_k = (self.bn_beta - self.bn_mean * scale).reshape(1, self.cmid)
        # 1x1 conv, output channels zero-padded to Cpad for lane-dense stores
        w2_mat = self.w2[:, :, 0, 0].T                                  # (Cmid, Cout)
        self.w2_k = jnp.zeros((self.cmid, self.cpad), jnp.bfloat16
                              ).at[:, :self.cout].set(w2_mat.astype(jnp.bfloat16))
        self.b2_k = jnp.zeros((1, self.cpad), jnp.float32
                              ).at[:, :self.cout].set(self.b2)

        self._head_calls = {}   # (B, H, W, decode) -> built pallas_call

    # ----- fused head (+ optional decode) -------------------------------------
    def _head_call(self, B, H, W, decode):
        key = (B, H, W, decode)
        if key in self._head_calls:
            return self._head_calls[key]

        TH = 8 if H % 8 == 0 else H          # row-strip height (spatial grid axis)
        nH = H // TH
        stride = self.image_size // H        # used only when decode=True
        Cin, Cmid, Cpad = self.in_channels, self.cmid, self.cpad
        kernel = _make_head_kernel(H, W, TH, Cin, Cmid, Cpad,
                                   5 + self.num_classes, self.anchors,
                                   stride, decode)

        call = pl.pallas_call(
            kernel,
            out_shape=jax.ShapeDtypeStruct((B, H, W, Cpad), jnp.float32),
            grid=(B, nH),
            in_specs=[
                # Full padded image per batch element; block index is constant
                # along the strip axis -> fetched once per batch element.
                pl.BlockSpec((None, H + 2, W + 2, Cin), lambda b, h: (b, 0, 0, 0)),
                _weight_spec((9 * Cin, Cmid), lambda b, h: (0, 0)),
                _weight_spec((1, Cmid), lambda b, h: (0, 0)),
                _weight_spec((Cmid, Cpad), lambda b, h: (0, 0)),
                _weight_spec((1, Cpad), lambda b, h: (0, 0)),
            ],
            out_specs=pl.BlockSpec((None, TH, W, Cpad), lambda b, h: (b, h, 0, 0)),
            compiler_params=pltpu.CompilerParams(
                dimension_semantics=("parallel", "parallel")),
        )
        self._head_calls[key] = call
        return call

    def _run_head(self, x_nchw, decode):
        B, Cin, H, W = x_nchw.shape
        # NCHW -> NHWC, bf16 cast and 1-px zero halo in one fused XLA copy (the
        # transpose+cast copy is needed anyway; the halo rides along for free).
        xpad = jnp.pad(jnp.transpose(x_nchw, (0, 2, 3, 1)).astype(jnp.bfloat16),
                       ((0, 0), (1, 1), (1, 1), (0, 0)))
        return self._head_call(B, H, W, decode)(
            xpad, self.w1_k, self.b1_k, self.w2_k, self.b2_k)

    # ----- forward -------------------------------------------------------------
    def __call__(self, x_nchw, training=False):
        B, _, G, _ = x_nchw.shape
        A, C5 = self.num_anchors, 5 + self.num_classes
        y = self._run_head(x_nchw, decode=not training)      # (B, G, G, Cpad) f32
        # channel c = a*C5 + cc  ->  (B, A, G, G, C5)
        # (matches view(B, A, C5, G, G).permute(0, 1, 3, 4, 2) on NCHW output)
        y = y[..., :A * C5].reshape(B, G, G, A, C5).transpose(0, 3, 1, 2, 4)
        if training:
            return y
        return y.reshape(B, A * G * G, C5)


# ---------------------------------------------------------------------------
# Pure-JAX reference (matmul operands cast to bf16 exactly like the kernel so
# the comparison isolates structural / decode correctness).
# ---------------------------------------------------------------------------
def reference_forward(layer, x_nchw, training=False):
    eps = 1e-5
    scale = layer.bn_gamma / jnp.sqrt(layer.bn_var + eps)
    bias = layer.bn_beta - layer.bn_mean * scale
    w1f = (layer.w1 * scale[:, None, None, None]).astype(jnp.bfloat16)
    y = lax.conv_general_dilated(x_nchw.astype(jnp.bfloat16), w1f, (1, 1), "SAME",
                                 dimension_numbers=("NCHW", "OIHW", "NCHW"),
                                 preferred_element_type=jnp.float32)
    y = y + bias[None, :, None, None]
    y = jnp.where(y >= 0, y, 0.01 * y)
    y = lax.conv_general_dilated(y.astype(jnp.bfloat16),
                                 layer.w2.astype(jnp.bfloat16), (1, 1), "VALID",
                                 dimension_numbers=("NCHW", "OIHW", "NCHW"),
                                 preferred_element_type=jnp.float32)
    y = y + layer.b2[None, :, None, None]

    B, _, G, _ = y.shape
    A, C5 = layer.num_anchors, 5 + layer.num_classes
    p = y.reshape(B, A, C5, G, G).transpose(0, 1, 3, 4, 2)
    if training:
        return p
    stride = layer.image_size // G
    grid = jnp.arange(G, dtype=jnp.float32)[None, None, None, :]
    aw = jnp.array([w / stride for (w, h) in layer.anchors],
                   jnp.float32).reshape(1, A, 1, 1)
    ah = jnp.array([h / stride for (w, h) in layer.anchors],
                   jnp.float32).reshape(1, A, 1, 1)
    bx = (jax.nn.sigmoid(p[..., 0]) + grid) * stride
    by = (jax.nn.sigmoid(p[..., 1]) + grid) * stride      # upstream grid_y bug
    bw = jnp.exp(p[..., 2]) * aw * stride
    bh = jnp.exp(p[..., 3]) * ah * stride
    obj = jax.nn.sigmoid(p[..., 4])
    cls = jax.nn.sigmoid(p[..., 5:])
    boxes = jnp.stack([bx, by, bw, bh], axis=-1).reshape(B, -1, 4)
    return jnp.concatenate(
        [boxes, obj.reshape(B, -1, 1), cls.reshape(B, -1, layer.num_classes)],
        axis=-1)


if __name__ == "__main__":
    key = jax.random.PRNGKey(0)
    in_channels, num_classes = 4, 8
    anchors = [(10, 13), (16, 30), (33, 23)]
    layer = YOLOLayerPallas(in_channels, anchors, num_classes,
                            image_size=416, seed=0)

    x = jax.random.normal(key, (2, in_channels, 16, 16), jnp.float32)

    out_train = layer(x, training=True)      # raw head output (training branch)
    out_eval = layer(x, training=False)      # decoded output (eval branch)
    jax.block_until_ready(out_train)
    jax.block_until_ready(out_eval)

    ref_train = reference_forward(layer, x, training=True)
    ref_eval = reference_forward(layer, x, training=False)

    assert out_train.shape == (2, 3, 16, 16, 13)
    assert out_eval.shape == (2, 3 * 16 * 16, 13)
    # Matmul operands are bf16 in both kernel and reference; the decode's exp
    # uses an approximate reciprocal -> modest (but structurally tight) tolerances.
    err_t = float(jnp.max(jnp.abs(out_train - ref_train)))
    err_e = float(jnp.max(jnp.abs(out_eval - ref_eval)))
    assert jnp.allclose(out_train, ref_train, rtol=5e-3, atol=5e-3), err_t
    assert jnp.allclose(out_eval, ref_eval, rtol=2e-2, atol=2e-2), err_e
    print("KERNEL_OK")
</pallas_src>

<mosaic_0001>
module attributes {stable_mosaic.version = 11 : i64} {
  func.func @k(%arg0: i32, %arg1: memref<8x128xf32, #tpu.memory_space<vmem>>, %arg2: memref<8x128xf32, #tpu.memory_space<vmem>>) attributes {dimension_semantics = [#tpu.dimension_semantics<arbitrary>], iteration_bounds = array<i64: 1>, scalar_prefetch = 0 : i64, scratch_operands = 0 : i64, tpu.core_type = #tpu.core_type<tc>, window_params = [{pipeline_mode = #tpu.pipeline_mode<synchronous>, transform_indices = @transform_0, window_bounds = array<i64: 8, 128>}, {pipeline_mode = #tpu.pipeline_mode<synchronous>, transform_indices = @transform_1, window_bounds = array<i64: 8, 128>}]} {
    %c0 = arith.constant 0 : index
    %c0_0 = arith.constant 0 : index
    %0 = vector.load %arg1[%c0, %c0_0] : memref<8x128xf32, #tpu.memory_space<vmem>>, vector<8x128xf32>
    %cst = arith.constant 1.000000e+00 : f32
    %1 = vector.broadcast %cst : f32 to vector<8x128xf32>
    %2 = arith.addf %0, %1 : vector<8x128xf32>
    %c0_1 = arith.constant 0 : index
    %c0_2 = arith.constant 0 : index
    %3 = vector.load %arg2[%c0_1, %c0_2] : memref<8x128xf32, #tpu.memory_space<vmem>>, vector<8x128xf32>
    tpu.vector_store %arg2[%c0_1, %c0_2], %2 {strides = array<i32>} : memref<8x128xf32, #tpu.memory_space<vmem>>, vector<8x128xf32>,
    return
  }
  func.func @transform_0(%arg0: i32) -> (i32, i32) {
    %c0_i32 = arith.constant 0 : i32
    %c0_i32_0 = arith.constant 0 : i32
    %c0_i32_1 = arith.constant 0 : i32
    return %c0_i32, %c0_i32_0 : i32, i32
  }
  func.func @transform_1(%arg0: i32) -> (i32, i32) {
    %c0_i32 = arith.constant 0 : i32
    %c0_i32_0 = arith.constant 0 : i32
    %c0_i32_1 = arith.constant 0 : i32
    return %c0_i32, %c0_i32_0 : i32, i32
  }
}

module attributes {stable_mosaic.version = 11 : i64} {
  func.func @kernel(%arg0: i32, %arg1: i32, %arg2: memref<1x18x18x4xbf16, #tpu.memory_space<vmem>>, %arg3: memref<36x8xbf16, #tpu.memory_space<vmem>>, %arg4: memref<1x8xf32, #tpu.memory_space<vmem>>, %arg5: memref<8x128xbf16, #tpu.memory_space<vmem>>, %arg6: memref<1x128xf32, #tpu.memory_space<vmem>>, %arg7: memref<1x8x16x128xf32, #tpu.memory_space<vmem>>) attributes {dimension_semantics = [#tpu.dimension_semantics<parallel>, #tpu.dimension_semantics<parallel>], iteration_bounds = array<i64: 2, 2>, scalar_prefetch = 0 : i64, scratch_operands = 0 : i64, tpu.core_type = #tpu.core_type<tc>, window_params = [{transform_indices = @transform_0, window_bounds = array<i64: 1, 18, 18, 4>}, {pipeline_mode = #tpu.pipeline_mode<synchronous>, transform_indices = @transform_1, window_bounds = array<i64: 36, 8>}, {pipeline_mode = #tpu.pipeline_mode<synchronous>, transform_indices = @transform_2, window_bounds = array<i64: 1, 8>}, {pipeline_mode = #tpu.pipeline_mode<synchronous>, transform_indices = @transform_3, window_bounds = array<i64: 8, 128>}, {pipeline_mode = #tpu.pipeline_mode<synchronous>, transform_indices = @transform_4, window_bounds = array<i64: 1, 128>}, {transform_indices = @transform_5, window_bounds = array<i64: 1, 8, 16, 128>}]} {
    %c8_i32 = arith.constant 8 : i32
    %0 = arith.muli %arg1, %c8_i32 : i32
    %1 = tpu.assume_multiple %0, 8 : i32
    %c0 = arith.constant 0 : index
    %2 = arith.index_cast %1 : i32 to index
    %c0_0 = arith.constant 0 : index
    %c0_1 = arith.constant 0 : index
    %3 = vector.load %arg2[%c0, %2, %c0_0, %c0_1] : memref<1x18x18x4xbf16, #tpu.memory_space<vmem>>, vector<1x10x18x4xbf16>
    %4 = vector.shape_cast %3 : vector<1x10x18x4xbf16> to vector<10x18x4xbf16>
    %5 = arith.extf %4 : vector<10x18x4xbf16> to vector<10x18x4xf32>
    %6 = vector.extract_strided_slice %5 {offsets = [0, 0, 0], sizes = [8, 16, 4], strides = [1, 1, 1]} : vector<10x18x4xf32> to vector<8x16x4xf32>
    %7 = vector.extract_strided_slice %5 {offsets = [0, 1, 0], sizes = [8, 16, 4], strides = [1, 1, 1]} : vector<10x18x4xf32> to vector<8x16x4xf32>
    %8 = vector.extract_strided_slice %5 {offsets = [0, 2, 0], sizes = [8, 16, 4], strides = [1, 1, 1]} : vector<10x18x4xf32> to vector<8x16x4xf32>
    %9 = vector.extract_strided_slice %5 {offsets = [1, 0, 0], sizes = [8, 16, 4], strides = [1, 1, 1]} : vector<10x18x4xf32> to vector<8x16x4xf32>
    %10 = vector.extract_strided_slice %5 {offsets = [1, 1, 0], sizes = [8, 16, 4], strides = [1, 1, 1]} : vector<10x18x4xf32> to vector<8x16x4xf32>
    %11 = vector.extract_strided_slice %5 {offsets = [1, 2, 0], sizes = [8, 16, 4], strides = [1, 1, 1]} : vector<10x18x4xf32> to vector<8x16x4xf32>
    %12 = vector.extract_strided_slice %5 {offsets = [2, 0, 0], sizes = [8, 16, 4], strides = [1, 1, 1]} : vector<10x18x4xf32> to vector<8x16x4xf32>
    %13 = vector.extract_strided_slice %5 {offsets = [2, 1, 0], sizes = [8, 16, 4], strides = [1, 1, 1]} : vector<10x18x4xf32> to vector<8x16x4xf32>
    %14 = vector.extract_strided_slice %5 {offsets = [2, 2, 0], sizes = [8, 16, 4], strides = [1, 1, 1]} : vector<10x18x4xf32> to vector<8x16x4xf32>
    %15 = tpu.concatenate %6, %7, %8, %9, %10, %11, %12, %13, %14 in 2 : vector<8x16x4xf32>, vector<8x16x4xf32>, vector<8x16x4xf32>, vector<8x16x4xf32>, vector<8x16x4xf32>, vector<8x16x4xf32>, vector<8x16x4xf32>, vector<8x16x4xf32>, vector<8x16x4xf32> -> vector<8x16x36xf32>
    %16 = vector.shape_cast %15 : vector<8x16x36xf32> to vector<128x36xf32>
    %17 = arith.truncf %16 : vector<128x36xf32> to vector<128x36xbf16>
    %c0_2 = arith.constant 0 : index
    %c0_3 = arith.constant 0 : index
    %18 = vector.load %arg3[%c0_2, %c0_3] : memref<36x8xbf16, #tpu.memory_space<vmem>>, vector<36x8xbf16>
    %cst = arith.constant dense<0.000000e+00> : vector<128x8xf32>
    %19 = tpu.matmul %17, %18, %cst {dimension_numbers = #tpu.dot_dimension_numbers<[1], [0], [0], [1], [0, 0, 1, 1], [], []>} : vector<128x36xbf16>, vector<36x8xbf16>, vector<128x8xf32> -> vector<128x8xf32>
    %c0_4 = arith.constant 0 : index
    %c0_5 = arith.constant 0 : index
    %20 = vector.load %arg4[%c0_4, %c0_5] : memref<1x8xf32, #tpu.memory_space<vmem>>, vector<1x8xf32>
    %21 = vector.broadcast %20 : vector<1x8xf32> to vector<128x8xf32>
    %22 = arith.addf %19, %21 : vector<128x8xf32>
    %cst_6 = arith.constant 0.000000e+00 : f32
    %23 = vector.broadcast %cst_6 : f32 to vector<128x8xf32>
    %24 = arith.cmpf oge, %22, %23 : vector<128x8xf32>
    %cst_7 = arith.constant 0.00999999977 : f32
    %25 = vector.broadcast %cst_7 : f32 to vector<128x8xf32>
    %26 = arith.mulf %25, %22 : vector<128x8xf32>
    %27 = arith.select %24, %22, %26 : vector<128x8xi1>, vector<128x8xf32>
    %28 = arith.truncf %27 : vector<128x8xf32> to vector<128x8xbf16>
    %c0_8 = arith.constant 0 : index
    %c0_9 = arith.constant 0 : index
    %29 = vector.load %arg5[%c0_8, %c0_9] : memref<8x128xbf16, #tpu.memory_space<vmem>>, vector<8x128xbf16>
    %cst_10 = arith.constant dense<0.000000e+00> : vector<128x128xf32>
    %30 = tpu.matmul %28, %29, %cst_10 {dimension_numbers = #tpu.dot_dimension_numbers<[1], [0], [0], [1], [0, 0, 1, 1], [], []>} : vector<128x8xbf16>, vector<8x128xbf16>, vector<128x128xf32> -> vector<128x128xf32>
    %c0_11 = arith.constant 0 : index
    %c0_12 = arith.constant 0 : index
    %31 = vector.load %arg6[%c0_11, %c0_12] : memref<1x128xf32, #tpu.memory_space<vmem>>, vector<1x128xf32>
    %32 = vector.broadcast %31 : vector<1x128xf32> to vector<128x128xf32>
    %33 = arith.addf %30, %32 : vector<128x128xf32>
    %34 = vector.shape_cast %33 : vector<128x128xf32> to vector<8x16x128xf32>
    %c0_13 = arith.constant 0 : index
    %c0_14 = arith.constant 0 : index
    %c0_15 = arith.constant 0 : index
    %c0_16 = arith.constant 0 : index
    %35 = vector.load %arg7[%c0_13, %c0_14, %c0_15, %c0_16] : memref<1x8x16x128xf32, #tpu.memory_space<vmem>>, vector<1x8x16x128xf32>
    %36 = vector.shape_cast %35 : vector<1x8x16x128xf32> to vector<8x16x128xf32>
    %37 = vector.shape_cast %34 : vector<8x16x128xf32> to vector<1x8x16x128xf32>
    tpu.vector_store %arg7[%c0_13, %c0_14, %c0_15, %c0_16], %37 {strides = array<i32>} : memref<1x8x16x128xf32, #tpu.memory_space<vmem>>, vector<1x8x16x128xf32>,
    return
  }
  func.func @transform_0(%arg0: i32, %arg1: i32) -> (i32, i32, i32, i32) {
    %c0_i32 = arith.constant 0 : i32
    %c0_i32_0 = arith.constant 0 : i32
    %c0_i32_1 = arith.constant 0 : i32
    %c0_i32_2 = arith.constant 0 : i32
    return %arg0, %c0_i32, %c0_i32_0, %c0_i32_1 : i32, i32, i32, i32
  }
  func.func @transform_1(%arg0: i32, %arg1: i32) -> (i32, i32) {
    %c0_i32 = arith.constant 0 : i32
    %c0_i32_0 = arith.constant 0 : i32
    %c0_i32_1 = arith.constant 0 : i32
    return %c0_i32, %c0_i32_0 : i32, i32
  }
  func.func @transform_2(%arg0: i32, %arg1: i32) -> (i32, i32) {
    %c0_i32 = arith.constant 0 : i32
    %c0_i32_0 = arith.constant 0 : i32
    %c0_i32_1 = arith.constant 0 : i32
    return %c0_i32, %c0_i32_0 : i32, i32
  }
  func.func @transform_3(%arg0: i32, %arg1: i32) -> (i32, i32) {
    %c0_i32 = arith.constant 0 : i32
    %c0_i32_0 = arith.constant 0 : i32
    %c0_i32_1 = arith.constant 0 : i32
    return %c0_i32, %c0_i32_0 : i32, i32
  }
  func.func @transform_4(%arg0: i32, %arg1: i32) -> (i32, i32) {
    %c0_i32 = arith.constant 0 : i32
    %c0_i32_0 = arith.constant 0 : i32
    %c0_i32_1 = arith.constant 0 : i32
    return %c0_i32, %c0_i32_0 : i32, i32
  }
  func.func @transform_5(%arg0: i32, %arg1: i32) -> (i32, i32, i32, i32) {
    %c0_i32 = arith.constant 0 : i32
    %c0_i32_0 = arith.constant 0 : i32
    %c0_i32_1 = arith.constant 0 : i32
    return %arg0, %arg1, %c0_i32, %c0_i32_0 : i32, i32, i32, i32
  }
}

</mosaic_0001>

<llo_original>
// kernel: tpu_custom_call.1
$region0: #{tpu_custom_call.1}
  #allocation0 [shape = 'u32[]', space=smem, size = 0x4, offset = 0x4, fixed_abs, tag = 'smem constant byte address 0x4 - core index']
  #allocation1 [shape = 'u32[144,128]{1,0:T(1,128)}', space=vmem, size = 0x12000, scoped, tag = 'internal scratch']
  %s0 = inlined_call_operand.hbm [shape: f32[8,128], index: 0, kind: input, shape index: {}]
  %s1 = inlined_call_operand.hbm [shape: f32[8,128], index: 1, kind: output, shape index: {}]
  %s2 = sld [smem:[#allocation0]]
  $region18: #{tpu_custom_call.1} parent=0
    _
  %s4 = ssub.s32 1, %s2
  %s5 = scalar_select 0, %s4, %s2
  $region1: #{tpu_custom_call.1} parent=0
    #allocation2 [shape = 'u8[4096]{0}', space=vmem, size = 0x1000, scoped, tag = 'input window, operand 0, single buffered']
    #allocation3 [shape = 's32[1]{0}', space=sflag, size = 0x4, scoped, tag = 'scoped memory for tpu_custom_call.1']
    #allocation4 [shape = 's32[1]{0}', space=sflag, size = 0x4, scoped, tag = 'scoped memory for tpu_custom_call.1']
    #allocation5 [shape = 'u8[4096]{0}', space=vmem, size = 0x1000, scoped, tag = 'output window, operand 0, single buffered']
    %6 = vsyncpa [#allocation3], 0
    %7 = vsyncpa [#allocation4], 0
    // Predicated region
    $region2: #{tpu_custom_call.1} parent=1 // pred_check
      _
    $region3: #{tpu_custom_call.1} parent=1 // pred_check_branch
      %9 = sbr.rel (0) target = $region5
    $region4: #{tpu_custom_call.1} parent=1 // pred_region
      %s11 = ssub.s32 128, 128
      %12 = vsyncadd [#allocation3], %s11
      %s14 = sshll.u32 [#allocation2], 4
      %s15 = int_to_ptr.vmem [resolvable:$true] %s14
      %17 = dma.hbm_to_vmem [thread:$0]  %s0, 128, %s15, [#allocation3]
    $region5: #{tpu_custom_call.1} parent=1 // pred_fallthru
      _
    // Predicated region
    $region6: #{tpu_custom_call.1} parent=1 // pred_check
      _
    $region7: #{tpu_custom_call.1} parent=1 // pred_check_branch
      %19 = sbr.rel (0) target = $region9
    $region8: #{tpu_custom_call.1} parent=1 // pred_region
      %20 = dma.done [#allocation3], 128
    $region9: #{tpu_custom_call.1} parent=1 // pred_fallthru
      _
    %v21 = vld [vmem:[#allocation2] sm:$0xff]
    %v22 = vadd.f32 %v21, 1.0
    %23 = vst [vmem:[#allocation5] sm:$0xff] %v22
    // Predicated region
    $region10: #{tpu_custom_call.1} parent=1 // pred_check
      _
    $region11: #{tpu_custom_call.1} parent=1 // pred_check_branch
      %25 = sbr.rel (0) target = $region13
    $region12: #{tpu_custom_call.1} parent=1 // pred_region
      %s27 = ssub.s32 128, 128
      %28 = vsyncadd [#allocation4], %s27
      %s30 = sshll.u32 [#allocation5], 4
      %s31 = int_to_ptr.vmem [resolvable:$true] %s30
      %33 = dma.vmem_to_hbm [thread:$0]  %s31, 128, %s1, [#allocation4]
    $region13: #{tpu_custom_call.1} parent=1 // pred_fallthru
      _
    // Predicated region
    $region14: #{tpu_custom_call.1} parent=1 // pred_check
      _
    $region15: #{tpu_custom_call.1} parent=1 // pred_check_branch
      %35 = sbr.rel (0) target = $region17
    $region16: #{tpu_custom_call.1} parent=1 // pred_region
      %36 = dma.done [#allocation4], 128
    $region17: #{tpu_custom_call.1} parent=1 // pred_fallthru
      _
    %37 = vsyncpa [#allocation3], 1
    %38 = vsyncpa [#allocation4], 1

// kernel: tpu_custom_call.1
$region0: #{tpu_custom_call.1}
  #allocation0 [shape = 'u32[]', space=smem, size = 0x4, offset = 0x4, fixed_abs, tag = 'smem constant byte address 0x4 - core index']
  #allocation1 [shape = 'u32[144,128]{1,0:T(1,128)}', space=vmem, size = 0x12000, scoped, tag = 'internal scratch']
  %s0 = inlined_call_operand.vmem [shape: bf16[2,18,18,4], index: 0, kind: input, shape index: {}]
  %s1 = inlined_call_operand.vmem [shape: bf16[36,8], index: 1, kind: input, shape index: {}]
  %s2 = inlined_call_operand.vmem [shape: f32[1,8], index: 2, kind: input, shape index: {}]
  %s3 = inlined_call_operand.vmem [shape: bf16[8,128], index: 3, kind: input, shape index: {}]
  %s4 = inlined_call_operand.vmem [shape: f32[1,128], index: 4, kind: input, shape index: {}]
  %s5 = inlined_call_operand.hbm [shape: f32[2,16,16,128], index: 5, kind: output, shape index: {}]
  %s6 = sld [smem:[#allocation0]]
  $region53: #{tpu_custom_call.1} parent=0
    _
  %s8 = ssub.s32 1, %s6
  %s9 = scalar_select 0, %s8, %s6
  $region1: #{tpu_custom_call.1} parent=0
    #allocation2 [shape = 'u8[131072]{0}', space=vmem, size = 0x20000, scoped, tag = 'output window, operand 0']
    #allocation3 [shape = 's32[2]{0}', space=sflag, size = 0x8, scoped, tag = 'scoped memory for tpu_custom_call.1']
    %10 = vsyncpa [#allocation3], 0
    %s11 = scalar_lea.sflag [#allocation3], 1
    %12 = vsyncpa %s11, 0
    loop: start=0, step=1, limit=6
    $region2: #{tpu_custom_call.1} parent=1 // loop_pre_header
      _
    $region3: #{tpu_custom_call.1} parent=1 // loop_header
      %s14 = sphi 0, %s18
      %p15 = scmp.ge.s32.totalorder %s14, 6
      %s21 = sphi 0, %s33
      %s22 = sphi 0, %s29
      %s23 = sphi 0, %s21
      %s24 = sphi 0, %s22
      %s25 = sphi 0, %s23
      %s26 = sphi 0, %s24
      %s36 = sphi 0, %s38
      %s39 = sphi 0, %s36
      %s40 = sphi 0, %s39
      %s56 = sphi 0, %s40
      %s60 = sphi 0, %s60
      %s62 = sphi 0, %s60
      %s63 = sphi 0, %s62
      %s77 = sphi 0, %s63
      %s81 = sphi 0, %s81
      %s83 = sphi 0, %s81
      %s84 = sphi 0, %s83
      %s98 = sphi 0, %s84
      %s102 = sphi 0, %s102
      %s104 = sphi 0, %s102
      %s105 = sphi 0, %s104
      %s119 = sphi 0, %s105
      %s123 = sphi 0, %s123
      %s125 = sphi 0, %s123
      %s126 = sphi 0, %s125
      %s140 = sphi 0, %s126
      %s148 = sphi 0, %s150
      %s151 = sphi 0, %s148
      %s152 = sphi 0, %s151
      %s168 = sphi 0, %s152
    $region4: #{tpu_custom_call.1} parent=1 // loop_header_branch
      %17 = sbr.rel (%p15) target = $region8
    $region5: #{tpu_custom_call.1} parent=1 // loop_body
      %s19 = ssub.s32 %s14, 1
      %s20 = ssub.s32 %s14, 2
      %s27 = sadd.s32 1, %s22
      %p28 = scmp.ge.s32.totalorder %s27, 2
      %s29 = scalar_select %p28, 0, %s27
      %s30 = sadd.s32 1, %s21
      %s31 = scalar_select %p28, %s30, %s21
      %p32 = scmp.ge.s32.totalorder %s31, 2
      %s33 = scalar_select %p32, 0, %s31
      %s34 = ssub.s32 %s21, %s33
      %p35 = scmp.eq.s32.totalorder %s34, 0
      %s37 = sadd.s32 %s36, 1
      %s38 = scalar_select %p35, %s36, %s37
      %p41 = pneg %p35
      %p42 = scmp.eq.s32.totalorder %s14, 3
      %p43 = por %p41, %p42
      %p44 = scmp.ne.s32.totalorder %s36, %s39
      %p45 = scmp.eq.s32.totalorder %s14, 0
      %p46 = por %p44, %p45
      %p47 = scmp.ne.s32.totalorder %s36, %s39
      %p48 = scmp.eq.s32.totalorder %s19, 3
      %p49 = por %p47, %p48
      %p50 = scmp.ne.s32.totalorder %s39, %s40
      %p51 = scmp.eq.s32.totalorder %s19, 0
      %p52 = por %p50, %p51
      %p53 = scmp.ne.s32.totalorder %s39, %s40
      %p54 = scmp.eq.s32.totalorder %s20, 3
      %p55 = por %p53, %p54
      %p57 = scmp.ne.s32.totalorder %s40, %s56
      %p58 = scmp.eq.s32.totalorder %s20, 0
      %p59 = por %p57, %p58
      %s61 = sadd.s32 %s60, 1
      %p64 = scmp.eq.s32.totalorder %s14, 3
      %p65 = scmp.ne.s32.totalorder %s60, %s62
      %p66 = scmp.eq.s32.totalorder %s14, 0
      %p67 = por %p65, %p66
      %p68 = scmp.ne.s32.totalorder %s60, %s62
      %p69 = scmp.eq.s32.totalorder %s19, 3
      %p70 = por %p68, %p69
      %p71 = scmp.ne.s32.totalorder %s62, %s63
      %p72 = scmp.eq.s32.totalorder %s19, 0
      %p73 = por %p71, %p72
      %p74 = scmp.ne.s32.totalorder %s62, %s63
      %p75 = scmp.eq.s32.totalorder %s20, 3
      %p76 = por %p74, %p75
      %p78 = scmp.ne.s32.totalorder %s63, %s77
      %p79 = scmp.eq.s32.totalorder %s20, 0
      %p80 = por %p78, %p79
      %s82 = sadd.s32 %s81, 1
      %p85 = scmp.eq.s32.totalorder %s14, 3
      %p86 = scmp.ne.s32.totalorder %s81, %s83
      %p87 = scmp.eq.s32.totalorder %s14, 0
      %p88 = por %p86, %p87
      %p89 = scmp.ne.s32.totalorder %s81, %s83
      %p90 = scmp.eq.s32.totalorder %s19, 3
      %p91 = por %p89, %p90
      %p92 = scmp.ne.s32.totalorder %s83, %s84
      %p93 = scmp.eq.s32.totalorder %s19, 0
      %p94 = por %p92, %p93
      %p95 = scmp.ne.s32.totalorder %s83, %s84
      %p96 = scmp.eq.s32.totalorder %s20, 3
      %p97 = por %p95, %p96
      %p99 = scmp.ne.s32.totalorder %s84, %s98
      %p100 = scmp.eq.s32.totalorder %s20, 0
      %p101 = por %p99, %p100
      %s103 = sadd.s32 %s102, 1
      %p106 = scmp.eq.s32.totalorder %s14, 3
      %p107 = scmp.ne.s32.totalorder %s102, %s104
      %p108 = scmp.eq.s32.totalorder %s14, 0
      %p109 = por %p107, %p108
      %p110 = scmp.ne.s32.totalorder %s102, %s104
      %p111 = scmp.eq.s32.totalorder %s19, 3
      %p112 = por %p110, %p111
      %p113 = scmp.ne.s32.totalorder %s104, %s105
      %p114 = scmp.eq.s32.totalorder %s19, 0
      %p115 = por %p113, %p114
      %p116 = scmp.ne.s32.totalorder %s104, %s105
      %p117 = scmp.eq.s32.totalorder %s20, 3
      %p118 = por %p116, %p117
      %p120 = scmp.ne.s32.totalorder %s105, %s119
      %p121 = scmp.eq.s32.totalorder %s20, 0
      %p122 = por %p120, %p121
      %s124 = sadd.s32 %s123, 1
      %p127 = scmp.eq.s32.totalorder %s14, 3
      %p128 = scmp.ne.s32.totalorder %s123, %s125
      %p129 = scmp.eq.s32.totalorder %s14, 0
      %p130 = por %p128, %p129
      %p131 = scmp.ne.s32.totalorder %s123, %s125
      %p132 = scmp.eq.s32.totalorder %s19, 3
      %p133 = por %p131, %p132
      %p134 = scmp.ne.s32.totalorder %s125, %s126
      %p135 = scmp.eq.s32.totalorder %s19, 0
      %p136 = por %p134, %p135
      %p137 = scmp.ne.s32.totalorder %s125, %s126
      %p138 = scmp.eq.s32.totalorder %s20, 3
      %p139 = por %p137, %p138
      %p141 = scmp.ne.s32.totalorder %s126, %s140
      %p142 = scmp.eq.s32.totalorder %s20, 0
      %p143 = por %p141, %p142
      %s144 = ssub.s32 %s21, %s33
      %s145 = ssub.s32 %s22, %s29
      %s146 = sor.u32 %s144, %s145
      %p147 = scmp.eq.s32.totalorder %s146, 0
      %s149 = sadd.s32 %s148, 1
      %s150 = scalar_select %p147, %s148, %s149
      %p153 = pneg %p147
      %p154 = scmp.eq.s32.totalorder %s14, 3
      %p155 = por %p153, %p154
      %p156 = scmp.ne.s32.totalorder %s148, %s151
      %p157 = scmp.eq.s32.totalorder %s14, 0
      %p158 = por %p156, %p157
      %p159 = scmp.ne.s32.totalorder %s148, %s151
      %p160 = scmp.eq.s32.totalorder %s19, 3
      %p161 = por %p159, %p160
      %p162 = scmp.ne.s32.totalorder %s151, %s152
      %p163 = scmp.eq.s32.totalorder %s19, 0
      %p164 = por %p162, %p163
      %p165 = scmp.ne.s32.totalorder %s151, %s152
      %p166 = scmp.eq.s32.totalorder %s20, 3
      %p167 = por %p165, %p166
      %p169 = scmp.ne.s32.totalorder %s152, %s168
      %p170 = scmp.eq.s32.totalorder %s20, 0
      %p171 = por %p169, %p170
      %p172 = scmp.le.s32.totalorder 1, %s14
      %p173 = scmp.lt.s32.totalorder %s14, 5
      %p174 = pnand %p172, %p173
      %p175 = pneg %p174
      // Predicated region
      $region9: #{tpu_custom_call.1} parent=5 // pred_check
        _
      $region10: #{tpu_custom_call.1} parent=5 // pred_check_branch
        %177 = sbr.rel (%p174) target = $region12
      $region11: #{tpu_custom_call.1} parent=5 // pred_region
        %s178 = ssub.s32 %s14, 1
        // Predicated region
        $region13: #{tpu_custom_call.1} parent=11 // pred_check
          %p179 = pneg %p73
        $region14: #{tpu_custom_call.1} parent=11 // pred_check_branch
          %181 = sbr.rel (%p179) target = $region16
        $region15: #{tpu_custom_call.1} parent=11 // pred_region
          _
        $region16: #{tpu_custom_call.1} parent=11 // pred_fallthru
          _
        // Predicated region
        $region17: #{tpu_custom_call.1} parent=11 // pred_check
          %p182 = pneg %p94
        $region18: #{tpu_custom_call.1} parent=11 // pred_check_branch
          %184 = sbr.rel (%p182) target = $region20
        $region19: #{tpu_custom_call.1} parent=11 // pred_region
          _
        $region20: #{tpu_custom_call.1} parent=11 // pred_fallthru
          _
        // Predicated region
        $region21: #{tpu_custom_call.1} parent=11 // pred_check
          %p185 = pneg %p115
        $region22: #{tpu_custom_call.1} parent=11 // pred_check_branch
          %187 = sbr.rel (%p185) target = $region24
        $region23: #{tpu_custom_call.1} parent=11 // pred_region
          _
        $region24: #{tpu_custom_call.1} parent=11 // pred_fallthru
          _
        // Predicated region
        $region25: #{tpu_custom_call.1} parent=11 // pred_check
          %p188 = pneg %p136
        $region26: #{tpu_custom_call.1} parent=11 // pred_check_branch
          %190 = sbr.rel (%p188) target = $region28
        $region27: #{tpu_custom_call.1} parent=11 // pred_region
          _
        $region28: #{tpu_custom_call.1} parent=11 // pred_fallthru
          _
      $region12: #{tpu_custom_call.1} parent=5 // pred_fallthru
        _
      %p191 = scmp.lt.s32.totalorder %s14, 4
      // Predicated region
      $region29: #{tpu_custom_call.1} parent=5 // pred_check
        %p192 = pneg %p191
      $region30: #{tpu_custom_call.1} parent=5 // pred_check_branch
        %194 = sbr.rel (%p192) target = $region32
      $region31: #{tpu_custom_call.1} parent=5 // pred_region
        // Predicated region
        $region33: #{tpu_custom_call.1} parent=31 // pred_check
          %p195 = pneg %p46
        $region34: #{tpu_custom_call.1} parent=31 // pred_check_branch
          %197 = sbr.rel (%p195) target = $region36
        $region35: #{tpu_custom_call.1} parent=31 // pred_region
          %p198 = scmp.lt.s32.totalorder %s21, 1
          %s199 = scalar_select %p198, %s21, 1
          %s200 = smul.addr %s199, 54
          %s201 = smul.addr %s200, 4
          %s202 = scalar_lea.vmem %s0, %s201
        $region36: #{tpu_custom_call.1} parent=31 // pred_fallthru
          _
      $region32: #{tpu_custom_call.1} parent=5 // pred_fallthru
        _
      %p203 = scmp.le.s32.totalorder 1, %s14
      %p204 = scmp.lt.s32.totalorder %s14, 5
      %p205 = pnand %p203, %p204
      %p206 = pneg %p205
      // Predicated region
      $region37: #{tpu_custom_call.1} parent=5 // pred_check
        _
      $region38: #{tpu_custom_call.1} parent=5 // pred_check_branch
        %208 = sbr.rel (%p205) target = $region40
      $region39: #{tpu_custom_call.1} parent=5 // pred_region
        %s209 = ssub.s32 %s14, 1
        %p210 = scmp.lt.s32.totalorder %s23, 1
        %s211 = scalar_select %p210, %s23, 1
        %s212 = smul.addr %s211, 54
        %s213 = smul.addr %s212, 4
        %s214 = scalar_lea.vmem %s0, %s213
        %p215 = pneg %p52
        %p216 = pneg %p49
        %p217 = pneg %p73
        %p218 = pneg %p70
        %p219 = pneg %p94
        %p220 = pneg %p91
        %p221 = pneg %p115
        %p222 = pneg %p112
        %p223 = pneg %p136
        %p224 = pneg %p133
        %p225 = pneg %p164
        %p226 = pneg %p161
        %s227 = sand.u32 %s151, 1
        %s228 = scalar_lea.sflag [#allocation3], %s227
        %s229 = sand.u32 %s151, 1
        %s230 = smul.addr %s229, 128
        %s231 = scalar_lea.vmem [#allocation2], %s230
        %p232 = scmp.lt.s32.totalorder %s23, 1
        %s233 = scalar_select %p232, %s23, 1
        %s234 = smul.addr %s233, 54
        %s235 = smul.addr %s234, 4
        %s236 = scalar_lea.vmem %s0, %s235
        %s237 = smul.u32 8, %s24
        %s239 = smul.u32 %s24, 8
        %s240 = smul.u32 %s239, 3
        %s241 = smul.addr %s240, 4
        %s242 = scalar_lea.vmem %s236, %s241
        %v243 = vld [vmem:[%s242] sm:$0xf]
        %v244 = vld [vmem:[%s242 + $0x4] sm:$0xf]
        %v245 = vld [vmem:[%s242 + $0x8] sm:$0x1]
        %v246 = vld [vmem:[%s242 + $0xc] sm:$0xf]
        %v247 = vld [vmem:[%s242 + $0x10] sm:$0xf]
        %v248 = vld [vmem:[%s242 + $0x14] sm:$0x1]
        %v249 = vld [vmem:[%s242 + $0x18] sm:$0xf]
        %v250 = vld [vmem:[%s242 + $0x1c] sm:$0xf]
        %v251 = vld [vmem:[%s242 + $0x20] sm:$0x1]
        %v252 = vld [vmem:[%s242 + $0x24] sm:$0xf]
        %v253 = vld [vmem:[%s242 + $0x28] sm:$0xf]
        %v254 = vld [vmem:[%s242 + $0x2c] sm:$0x1]
        %v255 = vld [vmem:[%s242 + $0x30] sm:$0xf]
        %v256 = vld [vmem:[%s242 + $0x34] sm:$0xf]
        %v257 = vld [vmem:[%s242 + $0x38] sm:$0x1]
        %v258 = vld [vmem:[%s242 + $0x3c] sm:$0xf]
        %v259 = vld [vmem:[%s242 + $0x40] sm:$0xf]
        %v260 = vld [vmem:[%s242 + $0x44] sm:$0x1]
        %v261 = vld [vmem:[%s242 + $0x48] sm:$0xf]
        %v262 = vld [vmem:[%s242 + $0x4c] sm:$0xf]
        %v263 = vld [vmem:[%s242 + $0x50] sm:$0x1]
        %v264 = vld [vmem:[%s242 + $0x54] sm:$0xf]
        %v265 = vld [vmem:[%s242 + $0x58] sm:$0xf]
        %v266 = vld [vmem:[%s242 + $0x5c] sm:$0x1]
        %v267 = vld [vmem:[%s242 + $0x60] sm:$0xf]
        %v268 = vld [vmem:[%s242 + $0x64] sm:$0xf]
        %v269 = vld [vmem:[%s242 + $0x68] sm:$0x1]
        %v270 = vld [vmem:[%s242 + $0x6c] sm:$0xf]
        %v271 = vld [vmem:[%s242 + $0x70] sm:$0xf]
        %v272 = vld [vmem:[%s242 + $0x74] sm:$0x1]
        %v273 = vunpack.c.l.bf16 %v243
        %v274 = vunpack.c.l.bf16 %v244
        %v275 = vunpack.c.l.bf16 %v245
        %v276 = vunpack.c.l.bf16 %v246
        %v277 = vunpack.c.l.bf16 %v247
        %v278 = vunpack.c.l.bf16 %v248
        %v279 = vunpack.c.l.bf16 %v249
        %v280 = vunpack.c.l.bf16 %v250
        %v281 = vunpack.c.l.bf16 %v251
        %v282 = vunpack.c.l.bf16 %v252
        %v283 = vunpack.c.l.bf16 %v253
        %v284 = vunpack.c.l.bf16 %v254
        %v285 = vunpack.c.l.bf16 %v255
        %v286 = vunpack.c.l.bf16 %v256
        %v287 = vunpack.c.l.bf16 %v257
        %v288 = vunpack.c.l.bf16 %v258
        %v289 = vunpack.c.l.bf16 %v259
        %v290 = vunpack.c.l.bf16 %v260
        %v291 = vunpack.c.l.bf16 %v261
        %v292 = vunpack.c.l.bf16 %v262
        %v293 = vunpack.c.l.bf16 %v263
        %v294 = vunpack.c.l.bf16 %v264
        %v295 = vunpack.c.l.bf16 %v265
        %v296 = vunpack.c.l.bf16 %v266
        %v297 = vunpack.c.l.bf16 %v267
        %v298 = vunpack.c.l.bf16 %v268
        %v299 = vunpack.c.l.bf16 %v269
        %v300 = vunpack.c.l.bf16 %v270
        %v301 = vunpack.c.l.bf16 %v271
        %v302 = vunpack.c.l.bf16 %v272
        %vm327 = vcmask 1046528
        %v328 = vrot.slane %v273, 1
        %v329 = vrot.slane %v274, 1
        %v330 = vsel %vm327, %v328, %v329
        %v331 = vrot.slane %v275, 1
        %v332 = vsel %vm327, %v329, %v331
        %v333 = vrot.slane %v276, 1
        %v334 = vrot.slane %v277, 1
        %v335 = vsel %vm327, %v333, %v334
        %v336 = vrot.slane %v278, 1
        %v337 = vsel %vm327, %v334, %v336
        %v338 = vrot.slane %v279, 1
        %v339 = vrot.slane %v280, 1
        %v340 = vsel %vm327, %v338, %v339
        %v341 = vrot.slane %v281, 1
        %v342 = vsel %vm327, %v339, %v341
        %v343 = vrot.slane %v282, 1
        %v344 = vrot.slane %v283, 1
        %v345 = vsel %vm327, %v343, %v344
        %v346 = vrot.slane %v284, 1
        %v347 = vsel %vm327, %v344, %v346
        %v348 = vrot.slane %v285, 1
        %v349 = vrot.slane %v286, 1
        %v350 = vsel %vm327, %v348, %v349
        %v351 = vrot.slane %v287, 1
        %v352 = vsel %vm327, %v349, %v351
        %v353 = vrot.slane %v288, 1
        %v354 = vrot.slane %v289, 1
        %v355 = vsel %vm327, %v353, %v354
        %v356 = vrot.slane %v290, 1
        %v357 = vsel %vm327, %v354, %v356
        %v358 = vrot.slane %v291, 1
        %v359 = vrot.slane %v292, 1
        %v360 = vsel %vm327, %v358, %v359
        %v361 = vrot.slane %v293, 1
        %v362 = vsel %vm327, %v359, %v361
        %v363 = vrot.slane %v294, 1
        %v364 = vrot.slane %v295, 1
        %v365 = vsel %vm327, %v363, %v364
        %v366 = vrot.slane %v296, 1
        %v367 = vsel %vm327, %v364, %v366
        %368 = vrot.lane.b32.xlu0 %v330, 4
        %v369 = vpop.permute.xlu0 %368
        %370 = vrot.lane.b32.xlu0 %v332, 4
        %v371 = vpop.permute.xlu0 %370
        %372 = vrot.lane.b32.xlu0 %v335, 4
        %v373 = vpop.permute.xlu0 %372
        %374 = vrot.lane.b32.xlu0 %v337, 4
        %v375 = vpop.permute.xlu0 %374
        %376 = vrot.lane.b32.xlu0 %v340, 4
        %v377 = vpop.permute.xlu0 %376
        %378 = vrot.lane.b32.xlu0 %v342, 4
        %v379 = vpop.permute.xlu0 %378
        %380 = vrot.lane.b32.xlu0 %v345, 4
        %v381 = vpop.permute.xlu0 %380
        %382 = vrot.lane.b32.xlu0 %v347, 4
        %v383 = vpop.permute.xlu0 %382
        %384 = vrot.lane.b32.xlu0 %v350, 4
        %v385 = vpop.permute.xlu0 %384
        %386 = vrot.lane.b32.xlu0 %v352, 4
        %v387 = vpop.permute.xlu0 %386
        %388 = vrot.lane.b32.xlu0 %v355, 4
        %v389 = vpop.permute.xlu0 %388
        %390 = vrot.lane.b32.xlu0 %v357, 4
        %v391 = vpop.permute.xlu0 %390
        %392 = vrot.lane.b32.xlu0 %v360, 4
        %v393 = vpop.permute.xlu0 %392
        %394 = vrot.lane.b32.xlu0 %v362, 4
        %v395 = vpop.permute.xlu0 %394
        %396 = vrot.lane.b32.xlu0 %v365, 4
        %v397 = vpop.permute.xlu0 %396
        %398 = vrot.lane.b32.xlu0 %v367, 4
        %v399 = vpop.permute.xlu0 %398
        %vm416 = vcmask 1045504
        %v417 = vrot.slane %v273, 2
        %v418 = vrot.slane %v274, 2
        %v419 = vsel %vm416, %v417, %v418
        %v420 = vrot.slane %v275, 2
        %v421 = vsel %vm416, %v418, %v420
        %v422 = vrot.slane %v276, 2
        %v423 = vrot.slane %v277, 2
        %v424 = vsel %vm416, %v422, %v423
        %v425 = vrot.slane %v278, 2
        %v426 = vsel %vm416, %v423, %v425
        %v427 = vrot.slane %v279, 2
        %v428 = vrot.slane %v280, 2
        %v429 = vsel %vm416, %v427, %v428
        %v430 = vrot.slane %v281, 2
        %v431 = vsel %vm416, %v428, %v430
        %v432 = vrot.slane %v282, 2
        %v433 = vrot.slane %v283, 2
        %v434 = vsel %vm416, %v432, %v433
        %v435 = vrot.slane %v284, 2
        %v436 = vsel %vm416, %v433, %v435
        %v437 = vrot.slane %v285, 2
        %v438 = vrot.slane %v286, 2
        %v439 = vsel %vm416, %v437, %v438
        %v440 = vrot.slane %v287, 2
        %v441 = vsel %vm416, %v438, %v440
        %v442 = vrot.slane %v288, 2
        %v443 = vrot.slane %v289, 2
        %v444 = vsel %vm416, %v442, %v443
        %v445 = vrot.slane %v290, 2
        %v446 = vsel %vm416, %v443, %v445
        %v447 = vrot.slane %v291, 2
        %v448 = vrot.slane %v292, 2
        %v449 = vsel %vm416, %v447, %v448
        %v450 = vrot.slane %v293, 2
        %v451 = vsel %vm416, %v448, %v450
        %v452 = vrot.slane %v294, 2
        %v453 = vrot.slane %v295, 2
        %v454 = vsel %vm416, %v452, %v453
        %v455 = vrot.slane %v296, 2
        %v456 = vsel %vm416, %v453, %v455
        %457 = vrot.lane.b32.xlu0 %v419, 8
        %v458 = vpop.permute.xlu0 %457
        %459 = vrot.lane.b32.xlu0 %v421, 8
        %v460 = vpop.permute.xlu0 %459
        %461 = vrot.lane.b32.xlu0 %v424, 8
        %v462 = vpop.permute.xlu0 %461
        %463 = vrot.lane.b32.xlu0 %v426, 8
        %v464 = vpop.permute.xlu0 %463
        %465 = vrot.lane.b32.xlu0 %v429, 8
        %v466 = vpop.permute.xlu0 %465
        %467 = vrot.lane.b32.xlu0 %v431, 8
        %v468 = vpop.permute.xlu0 %467
        %469 = vrot.lane.b32.xlu0 %v434, 8
        %v470 = vpop.permute.xlu0 %469
        %471 = vrot.lane.b32.xlu0 %v436, 8
        %v472 = vpop.permute.xlu0 %471
        %473 = vrot.lane.b32.xlu0 %v439, 8
        %v474 = vpop.permute.xlu0 %473
        %475 = vrot.lane.b32.xlu0 %v441, 8
        %v476 = vpop.permute.xlu0 %475
        %477 = vrot.lane.b32.xlu0 %v444, 8
        %v478 = vpop.permute.xlu0 %477
        %479 = vrot.lane.b32.xlu0 %v446, 8
        %v480 = vpop.permute.xlu0 %479
        %481 = vrot.lane.b32.xlu0 %v449, 8
        %v482 = vpop.permute.xlu0 %481
        %483 = vrot.lane.b32.xlu0 %v451, 8
        %v484 = vpop.permute.xlu0 %483
        %485 = vrot.lane.b32.xlu0 %v454, 8
        %v486 = vpop.permute.xlu0 %485
        %487 = vrot.lane.b32.xlu0 %v456, 8
        %v488 = vpop.permute.xlu0 %487
        %507 = vrot.lane.b32.xlu0 %v276, 12
        %v508 = vpop.permute.xlu0 %507
        %509 = vrot.lane.b32.xlu0 %v277, 12
        %v510 = vpop.permute.xlu0 %509
        %511 = vrot.lane.b32.xlu0 %v279, 12
        %v512 = vpop.permute.xlu0 %511
        %513 = vrot.lane.b32.xlu0 %v280, 12
        %v514 = vpop.permute.xlu0 %513
        %515 = vrot.lane.b32.xlu0 %v282, 12
        %v516 = vpop.permute.xlu0 %515
        %517 = vrot.lane.b32.xlu0 %v283, 12
        %v518 = vpop.permute.xlu0 %517
        %519 = vrot.lane.b32.xlu0 %v285, 12
        %v520 = vpop.permute.xlu0 %519
        %521 = vrot.lane.b32.xlu0 %v286, 12
        %v522 = vpop.permute.xlu0 %521
        %523 = vrot.lane.b32.xlu0 %v288, 12
        %v524 = vpop.permute.xlu0 %523
        %525 = vrot.lane.b32.xlu0 %v289, 12
        %v526 = vpop.permute.xlu0 %525
        %527 = vrot.lane.b32.xlu0 %v291, 12
        %v528 = vpop.permute.xlu0 %527
        %529 = vrot.lane.b32.xlu0 %v292, 12
        %v530 = vpop.permute.xlu0 %529
        %531 = vrot.lane.b32.xlu0 %v294, 12
        %v532 = vpop.permute.xlu0 %531
        %533 = vrot.lane.b32.xlu0 %v295, 12
        %v534 = vpop.permute.xlu0 %533
        %535 = vrot.lane.b32.xlu0 %v297, 12
        %v536 = vpop.permute.xlu0 %535
        %537 = vrot.lane.b32.xlu0 %v298, 12
        %v538 = vpop.permute.xlu0 %537
        %v556 = vrot.slane %v297, 1
        %v557 = vrot.slane %v298, 1
        %v558 = vsel %vm327, %v556, %v557
        %v559 = vrot.slane %v299, 1
        %v560 = vsel %vm327, %v557, %v559
        %561 = vrot.lane.b32.xlu0 %v335, 16
        %v562 = vpop.permute.xlu0 %561
        %563 = vrot.lane.b32.xlu0 %v337, 16
        %v564 = vpop.permute.xlu0 %563
        %565 = vrot.lane.b32.xlu0 %v340, 16
        %v566 = vpop.permute.xlu0 %565
        %567 = vrot.lane.b32.xlu0 %v342, 16
        %v568 = vpop.permute.xlu0 %567
        %569 = vrot.lane.b32.xlu0 %v345, 16
        %v570 = vpop.permute.xlu0 %569
        %571 = vrot.lane.b32.xlu0 %v347, 16
        %v572 = vpop.permute.xlu0 %571
        %573 = vrot.lane.b32.xlu0 %v350, 16
        %v574 = vpop.permute.xlu0 %573
        %575 = vrot.lane.b32.xlu0 %v352, 16
        %v576 = vpop.permute.xlu0 %575
        %577 = vrot.lane.b32.xlu0 %v355, 16
        %v578 = vpop.permute.xlu0 %577
        %579 = vrot.lane.b32.xlu0 %v357, 16
        %v580 = vpop.permute.xlu0 %579
        %581 = vrot.lane.b32.xlu0 %v360, 16
        %v582 = vpop.permute.xlu0 %581
        %583 = vrot.lane.b32.xlu0 %v362, 16
        %v584 = vpop.permute.xlu0 %583
        %585 = vrot.lane.b32.xlu0 %v365, 16
        %v586 = vpop.permute.xlu0 %585
        %587 = vrot.lane.b32.xlu0 %v367, 16
        %v588 = vpop.permute.xlu0 %587
        %589 = vrot.lane.b32.xlu0 %v558, 16
        %v590 = vpop.permute.xlu0 %589
        %591 = vrot.lane.b32.xlu0 %v560, 16
        %v592 = vpop.permute.xlu0 %591
        %v609 = vrot.slane %v297, 2
        %v610 = vrot.slane %v298, 2
        %v611 = vsel %vm416, %v609, %v610
        %v612 = vrot.slane %v299, 2
        %v613 = vsel %vm416, %v610, %v612
        %614 = vrot.lane.b32.xlu0 %v424, 20
        %v615 = vpop.permute.xlu0 %614
        %616 = vrot.lane.b32.xlu0 %v426, 20
        %v617 = vpop.permute.xlu0 %616
        %618 = vrot.lane.b32.xlu0 %v429, 20
        %v619 = vpop.permute.xlu0 %618
        %620 = vrot.lane.b32.xlu0 %v431, 20
        %v621 = vpop.permute.xlu0 %620
        %622 = vrot.lane.b32.xlu0 %v434, 20
        %v623 = vpop.permute.xlu0 %622
        %624 = vrot.lane.b32.xlu0 %v436, 20
        %v625 = vpop.permute.xlu0 %624
        %626 = vrot.lane.b32.xlu0 %v439, 20
        %v627 = vpop.permute.xlu0 %626
        %628 = vrot.lane.b32.xlu0 %v441, 20
        %v629 = vpop.permute.xlu0 %628
        %630 = vrot.lane.b32.xlu0 %v444, 20
        %v631 = vpop.permute.xlu0 %630
        %632 = vrot.lane.b32.xlu0 %v446, 20
        %v633 = vpop.permute.xlu0 %632
        %634 = vrot.lane.b32.xlu0 %v449, 20
        %v635 = vpop.permute.xlu0 %634
        %636 = vrot.lane.b32.xlu0 %v451, 20
        %v637 = vpop.permute.xlu0 %636
        %638 = vrot.lane.b32.xlu0 %v454, 20
        %v639 = vpop.permute.xlu0 %638
        %640 = vrot.lane.b32.xlu0 %v456, 20
        %v641 = vpop.permute.xlu0 %640
        %642 = vrot.lane.b32.xlu0 %v611, 20
        %v643 = vpop.permute.xlu0 %642
        %644 = vrot.lane.b32.xlu0 %v613, 20
        %v645 = vpop.permute.xlu0 %644
        %664 = vrot.lane.b32.xlu0 %v279, 24
        %v665 = vpop.permute.xlu0 %664
        %666 = vrot.lane.b32.xlu0 %v280, 24
        %v667 = vpop.permute.xlu0 %666
        %668 = vrot.lane.b32.xlu0 %v282, 24
        %v669 = vpop.permute.xlu0 %668
        %670 = vrot.lane.b32.xlu0 %v283, 24
        %v671 = vpop.permute.xlu0 %670
        %672 = vrot.lane.b32.xlu0 %v285, 24
        %v673 = vpop.permute.xlu0 %672
        %674 = vrot.lane.b32.xlu0 %v286, 24
        %v675 = vpop.permute.xlu0 %674
        %676 = vrot.lane.b32.xlu0 %v288, 24
        %v677 = vpop.permute.xlu0 %676
        %678 = vrot.lane.b32.xlu0 %v289, 24
        %v679 = vpop.permute.xlu0 %678
        %680 = vrot.lane.b32.xlu0 %v291, 24
        %v681 = vpop.permute.xlu0 %680
        %682 = vrot.lane.b32.xlu0 %v292, 24
        %v683 = vpop.permute.xlu0 %682
        %684 = vrot.lane.b32.xlu0 %v294, 24
        %v685 = vpop.permute.xlu0 %684
        %686 = vrot.lane.b32.xlu0 %v295, 24
        %v687 = vpop.permute.xlu0 %686
        %688 = vrot.lane.b32.xlu0 %v297, 24
        %v689 = vpop.permute.xlu0 %688
        %690 = vrot.lane.b32.xlu0 %v298, 24
        %v691 = vpop.permute.xlu0 %690
        %692 = vrot.lane.b32.xlu0 %v300, 24
        %v693 = vpop.permute.xlu0 %692
        %694 = vrot.lane.b32.xlu0 %v301, 24
        %v695 = vpop.permute.xlu0 %694
        %v713 = vrot.slane %v300, 1
        %v714 = vrot.slane %v301, 1
        %v715 = vsel %vm327, %v713, %v714
        %v716 = vrot.slane %v302, 1
        %v717 = vsel %vm327, %v714, %v716
        %718 = vrot.lane.b32.xlu0 %v340, 28
        %v719 = vpop.permute.xlu0 %718
        %720 = vrot.lane.b32.xlu0 %v342, 28
        %v721 = vpop.permute.xlu0 %720
        %722 = vrot.lane.b32.xlu0 %v345, 28
        %v723 = vpop.permute.xlu0 %722
        %724 = vrot.lane.b32.xlu0 %v347, 28
        %v725 = vpop.permute.xlu0 %724
        %726 = vrot.lane.b32.xlu0 %v350, 28
        %v727 = vpop.permute.xlu0 %726
        %728 = vrot.lane.b32.xlu0 %v352, 28
        %v729 = vpop.permute.xlu0 %728
        %730 = vrot.lane.b32.xlu0 %v355, 28
        %v731 = vpop.permute.xlu0 %730
        %732 = vrot.lane.b32.xlu0 %v357, 28
        %v733 = vpop.permute.xlu0 %732
        %734 = vrot.lane.b32.xlu0 %v360, 28
        %v735 = vpop.permute.xlu0 %734
        %736 = vrot.lane.b32.xlu0 %v362, 28
        %v737 = vpop.permute.xlu0 %736
        %738 = vrot.lane.b32.xlu0 %v365, 28
        %v739 = vpop.permute.xlu0 %738
        %740 = vrot.lane.b32.xlu0 %v367, 28
        %v741 = vpop.permute.xlu0 %740
        %742 = vrot.lane.b32.xlu0 %v558, 28
        %v743 = vpop.permute.xlu0 %742
        %744 = vrot.lane.b32.xlu0 %v560, 28
        %v745 = vpop.permute.xlu0 %744
        %746 = vrot.lane.b32.xlu0 %v715, 28
        %v747 = vpop.permute.xlu0 %746
        %748 = vrot.lane.b32.xlu0 %v717, 28
        %v749 = vpop.permute.xlu0 %748
        %v766 = vrot.slane %v300, 2
        %v767 = vrot.slane %v301, 2
        %v768 = vsel %vm416, %v766, %v767
        %v769 = vrot.slane %v302, 2
        %v770 = vsel %vm416, %v767, %v769
        %771 = vrot.lane.b32.xlu0 %v429, 32
        %v772 = vpop.permute.xlu0 %771
        %773 = vrot.lane.b32.xlu0 %v431, 32
        %v774 = vpop.permute.xlu0 %773
        %775 = vrot.lane.b32.xlu0 %v434, 32
        %v776 = vpop.permute.xlu0 %775
        %777 = vrot.lane.b32.xlu0 %v436, 32
        %v778 = vpop.permute.xlu0 %777
        %779 = vrot.lane.b32.xlu0 %v439, 32
        %v780 = vpop.permute.xlu0 %779
        %781 = vrot.lane.b32.xlu0 %v441, 32
        %v782 = vpop.permute.xlu0 %781
        %783 = vrot.lane.b32.xlu0 %v444, 32
        %v784 = vpop.permute.xlu0 %783
        %785 = vrot.lane.b32.xlu0 %v446, 32
        %v786 = vpop.permute.xlu0 %785
        %787 = vrot.lane.b32.xlu0 %v449, 32
        %v788 = vpop.permute.xlu0 %787
        %789 = vrot.lane.b32.xlu0 %v451, 32
        %v790 = vpop.permute.xlu0 %789
        %791 = vrot.lane.b32.xlu0 %v454, 32
        %v792 = vpop.permute.xlu0 %791
        %793 = vrot.lane.b32.xlu0 %v456, 32
        %v794 = vpop.permute.xlu0 %793
        %795 = vrot.lane.b32.xlu0 %v611, 32
        %v796 = vpop.permute.xlu0 %795
        %797 = vrot.lane.b32.xlu0 %v613, 32
        %v798 = vpop.permute.xlu0 %797
        %799 = vrot.lane.b32.xlu0 %v768, 32
        %v800 = vpop.permute.xlu0 %799
        %801 = vrot.lane.b32.xlu0 %v770, 32
        %v802 = vpop.permute.xlu0 %801
        %vm819 = vcmask 31744
        %v820 = vsel %vm819, %v273, %v369
        %v821 = vsel %vm819, %v274, %v371
        %v822 = vsel %vm819, %v276, %v373
        %v823 = vsel %vm819, %v277, %v375
        %v824 = vsel %vm819, %v279, %v377
        %v825 = vsel %vm819, %v280, %v379
        %v826 = vsel %vm819, %v282, %v381
        %v827 = vsel %vm819, %v283, %v383
        %v828 = vsel %vm819, %v285, %v385
        %v829 = vsel %vm819, %v286, %v387
        %v830 = vsel %vm819, %v288, %v389
        %v831 = vsel %vm819, %v289, %v391
        %v832 = vsel %vm819, %v291, %v393
        %v833 = vsel %vm819, %v292, %v395
        %v834 = vsel %vm819, %v294, %v397
        %v835 = vsel %vm819, %v295, %v399
        %vm836 = vcmask 64512
        %v837 = vsel %vm836, %v820, %v458
        %v838 = vsel %vm836, %v821, %v460
        %v839 = vsel %vm836, %v822, %v462
        %v840 = vsel %vm836, %v823, %v464
        %v841 = vsel %vm836, %v824, %v466
        %v842 = vsel %vm836, %v825, %v468
        %v843 = vsel %vm836, %v826, %v470
        %v844 = vsel %vm836, %v827, %v472
        %v845 = vsel %vm836, %v828, %v474
        %v846 = vsel %vm836, %v829, %v476
        %v847 = vsel %vm836, %v830, %v478
        %v848 = vsel %vm836, %v831, %v480
        %v849 = vsel %vm836, %v832, %v482
        %v850 = vsel %vm836, %v833, %v484
        %v851 = vsel %vm836, %v834, %v486
        %v852 = vsel %vm836, %v835, %v488
        %vm853 = vcmask 97280
        %v854 = vsel %vm853, %v837, %v508
        %v855 = vsel %vm853, %v838, %v510
        %v856 = vsel %vm853, %v839, %v512
        %v857 = vsel %vm853, %v840, %v514
        %v858 = vsel %vm853, %v841, %v516
        %v859 = vsel %vm853, %v842, %v518
        %v860 = vsel %vm853, %v843, %v520
        %v861 = vsel %vm853, %v844, %v522
        %v862 = vsel %vm853, %v845, %v524
        %v863 = vsel %vm853, %v846, %v526
        %v864 = vsel %vm853, %v847, %v528
        %v865 = vsel %vm853, %v848, %v530
        %v866 = vsel %vm853, %v849, %v532
        %v867 = vsel %vm853, %v850, %v534
        %v868 = vsel %vm853, %v851, %v536
        %v869 = vsel %vm853, %v852, %v538
        %vm870 = vcmask 130048
        %v871 = vsel %vm870, %v854, %v562
        %v872 = vsel %vm870, %v855, %v564
        %v873 = vsel %vm870, %v856, %v566
        %v874 = vsel %vm870, %v857, %v568
        %v875 = vsel %vm870, %v858, %v570
        %v876 = vsel %vm870, %v859, %v572
        %v877 = vsel %vm870, %v860, %v574
        %v878 = vsel %vm870, %v861, %v576
        %v879 = vsel %vm870, %v862, %v578
        %v880 = vsel %vm870, %v863, %v580
        %v881 = vsel %vm870, %v864, %v582
        %v882 = vsel %vm870, %v865, %v584
        %v883 = vsel %vm870, %v866, %v586
        %v884 = vsel %vm870, %v867, %v588
        %v885 = vsel %vm870, %v868, %v590
        %v886 = vsel %vm870, %v869, %v592
        %vm887 = vcmask 162816
        %v888 = vsel %vm887, %v871, %v615
        %v889 = vsel %vm887, %v872, %v617
        %v890 = vsel %vm887, %v873, %v619
        %v891 = vsel %vm887, %v874, %v621
        %v892 = vsel %vm887, %v875, %v623
        %v893 = vsel %vm887, %v876, %v625
        %v894 = vsel %vm887, %v877, %v627
        %v895 = vsel %vm887, %v878, %v629
        %v896 = vsel %vm887, %v879, %v631
        %v897 = vsel %vm887, %v880, %v633
        %v898 = vsel %vm887, %v881, %v635
        %v899 = vsel %vm887, %v882, %v637
        %v900 = vsel %vm887, %v883, %v639
        %v901 = vsel %vm887, %v884, %v641
        %v902 = vsel %vm887, %v885, %v643
        %v903 = vsel %vm887, %v886, %v645
        %vm904 = vcmask 195584
        %v905 = vsel %vm904, %v888, %v665
        %v906 = vsel %vm904, %v889, %v667
        %v907 = vsel %vm904, %v890, %v669
        %v908 = vsel %vm904, %v891, %v671
        %v909 = vsel %vm904, %v892, %v673
        %v910 = vsel %vm904, %v893, %v675
        %v911 = vsel %vm904, %v894, %v677
        %v912 = vsel %vm904, %v895, %v679
        %v913 = vsel %vm904, %v896, %v681
        %v914 = vsel %vm904, %v897, %v683
        %v915 = vsel %vm904, %v898, %v685
        %v916 = vsel %vm904, %v899, %v687
        %v917 = vsel %vm904, %v900, %v689
        %v918 = vsel %vm904, %v901, %v691
        %v919 = vsel %vm904, %v902, %v693
        %v920 = vsel %vm904, %v903, %v695
        %vm921 = vcmask 228352
        %v922 = vsel %vm921, %v905, %v719
        %v923 = vsel %vm921, %v906, %v721
        %v924 = vsel %vm921, %v907, %v723
        %v925 = vsel %vm921, %v908, %v725
        %v926 = vsel %vm921, %v909, %v727
        %v927 = vsel %vm921, %v910, %v729
        %v928 = vsel %vm921, %v911, %v731
        %v929 = vsel %vm921, %v912, %v733
        %v930 = vsel %vm921, %v913, %v735
        %v931 = vsel %vm921, %v914, %v737
        %v932 = vsel %vm921, %v915, %v739
        %v933 = vsel %vm921, %v916, %v741
        %v934 = vsel %vm921, %v917, %v743
        %v935 = vsel %vm921, %v918, %v745
        %v936 = vsel %vm921, %v919, %v747
        %v937 = vsel %vm921, %v920, %v749
        %vm938 = vcmask 261120
        %v939 = vsel %vm938, %v922, %v772
        %v940 = vsel %vm938, %v923, %v774
        %v941 = vsel %vm938, %v924, %v776
        %v942 = vsel %vm938, %v925, %v778
        %v943 = vsel %vm938, %v926, %v780
        %v944 = vsel %vm938, %v927, %v782
        %v945 = vsel %vm938, %v928, %v784
        %v946 = vsel %vm938, %v929, %v786
        %v947 = vsel %vm938, %v930, %v788
        %v948 = vsel %vm938, %v931, %v790
        %v949 = vsel %vm938, %v932, %v792
        %v950 = vsel %vm938, %v933, %v794
        %v951 = vsel %vm938, %v934, %v796
        %v952 = vsel %vm938, %v935, %v798
        %v953 = vsel %vm938, %v936, %v800
        %v954 = vsel %vm938, %v937, %v802
        %v955 = vpack.c.bf16 %v940, %v939
        %v956 = vpack.c.bf16 %v942, %v941
        %v957 = vpack.c.bf16 %v944, %v943
        %v958 = vpack.c.bf16 %v946, %v945
        %v959 = vpack.c.bf16 %v948, %v947
        %v960 = vpack.c.bf16 %v950, %v949
        %v961 = vpack.c.bf16 %v952, %v951
        %v962 = vpack.c.bf16 %v954, %v953
        %v963 = vld [vmem:[%s1] sm:$0xf]
        %v964 = vld [vmem:[%s1 + $0x4] sm:$0xf]
        %v965 = vld [vmem:[%s1 + $0x8] sm:$0xf]
        %v966 = vld [vmem:[%s1 + $0xc] sm:$0xf]
        %v967 = vld [vmem:[%s1 + $0x10] sm:$0x3]
        %v968 = vld [vmem:[%s2] sm:$0x1]
        %v970 = vlaneseq
        %v971 = vshrl.u32 %v970, 7
        %v972 = vsub.s32 0, %v971
        %v973 = vrot.slane %v968, %v972
        %v980 = vunpack.c.l.b16 %v963
        %v981 = vunpack.c.l.b16 %v964
        %v982 = vunpack.c.l.b16 %v965
        %v983 = vunpack.c.l.b16 %v966
        %v984 = vunpack.c.l.b16 %v967
        %v985 = vpack.c.b16 %v981, %v980
        %v986 = vpack.c.b16 %v983, %v982
        %v987 = vpack.c.b16 %v984, %v984
        %vm990 = vcmask 293888
        %v992 = vsel %vm990, %v955, 0
        %v995 = vsel %vm990, %v956, 0
        %v998 = vsel %vm990, %v957, 0
        %v1001 = vsel %vm990, %v958, 0
        %v1004 = vsel %vm990, %v959, 0
        %v1007 = vsel %vm990, %v960, 0
        %v1010 = vsel %vm990, %v961, 0
        %v1013 = vsel %vm990, %v962, 0
        %vm1015 = vcmask 1041408
        %v1017 = vsel %vm1015, %v987, 0
        %1019 = vmatprep.subr.bf16.mxu0 0
        %1020 = vmatpush1.bf16.msra.mxu0 %v985
        %1021 = vmatprep.subr.bf16.mxu0 0
        %1022 = vmatpush1.bf16.msra.mxu0 %v986
        %1023 = vmatprep.subr.bf16.mxu0 0
        %1024 = vmatpush1.bf16.msra.mxu0 %v1017
        %1025 = vmatprep.subr.bf16.mxu0 0
        %1026 = vmatpush1.bf16.msra.mxu0 0
        %1027 = vmatprep.subr.bf16.mxu0 0
        %1028 = vmatpush1.bf16.msra.mxu0 0
        %1029 = vmatprep.subr.bf16.mxu0 0
        %1030 = vmatpush1.bf16.msra.mxu0 0
        %1031 = vmatprep.subr.bf16.mxu0 0
        %1032 = vmatpush1.bf16.msra.mxu0 0
        %1033 = vmatprep.subr.bf16.mxu0 0
        %1034 = vmatpush1.bf16.msra.mxu0 0
        %1035 = vmatprep.subr.bf16.mxu0 0
        %1036 = vmatpush1.bf16.msra.mxu0 0
        %1037 = vmatprep.subr.bf16.mxu0 0
        %1038 = vmatpush1.bf16.msra.mxu0 0
        %1039 = vmatprep.subr.bf16.mxu0 0
        %1040 = vmatpush1.bf16.msra.mxu0 0
        %1041 = vmatprep.subr.bf16.mxu0 0
        %1042 = vmatpush1.bf16.msra.mxu0 0
        %1043 = vmatprep.subr.bf16.mxu0 0
        %1044 = vmatpush1.bf16.msra.mxu0 0
        %1045 = vmatprep.subr.bf16.mxu0 0
        %1046 = vmatpush1.bf16.msra.mxu0 0
        %1047 = vmatprep.subr.bf16.mxu0 0
        %1048 = vmatpush1.bf16.msra.mxu0 0
        %1049 = vmatprep.subr.bf16.mxu0 0
        %1050 = vmatpush1.bf16.msra.mxu0 0
        %1051 = vmatprep.mubr.bf16.mxu0 0
        %1052 = vmatmul.mubr.bf16.gmra.mrb[0].mxu0 %v992
        %v1053 = vpop.f32.mrb[0].mxu0
        %v1054 = vadd.f32 %v973, %v1053
        %v1055 = vpop.f32.mrb[0].mxu0
        %v1056 = vpop.f32.mrb[0].mxu0
        %v1057 = vadd.f32 %v973, %v1056
        %v1058 = vpop.f32.mrb[0].mxu0
        %1059 = vmatprep.mubr.bf16.mxu0 0
        %1060 = vmatmul.mubr.bf16.gmra.mrb[0].mxu0 %v995
        %v1061 = vpop.f32.mrb[0].mxu0
        %v1062 = vadd.f32 %v973, %v1061
        %v1063 = vpop.f32.mrb[0].mxu0
        %v1064 = vpop.f32.mrb[0].mxu0
        %v1065 = vadd.f32 %v973, %v1064
        %v1066 = vpop.f32.mrb[0].mxu0
        %1067 = vmatprep.mubr.bf16.mxu0 0
        %1068 = vmatmul.mubr.bf16.gmra.mrb[0].mxu0 %v998
        %v1069 = vpop.f32.mrb[0].mxu0
        %v1070 = vadd.f32 %v973, %v1069
        %v1071 = vpop.f32.mrb[0].mxu0
        %v1072 = vpop.f32.mrb[0].mxu0
        %v1073 = vadd.f32 %v973, %v1072
        %v1074 = vpop.f32.mrb[0].mxu0
        %1075 = vmatprep.mubr.bf16.mxu0 0
        %1076 = vmatmul.mubr.bf16.gmra.mrb[0].mxu0 %v1001
        %v1077 = vpop.f32.mrb[0].mxu0
        %v1078 = vadd.f32 %v973, %v1077
        %v1079 = vpop.f32.mrb[0].mxu0
        %v1080 = vpop.f32.mrb[0].mxu0
        %v1081 = vadd.f32 %v973, %v1080
        %v1082 = vpop.f32.mrb[0].mxu0
        %1083 = vmatprep.mubr.bf16.mxu0 0
        %1084 = vmatmul.mubr.bf16.gmra.mrb[0].mxu0 %v1004
        %v1085 = vpop.f32.mrb[0].mxu0
        %v1086 = vadd.f32 %v973, %v1085
        %v1087 = vpop.f32.mrb[0].mxu0
        %v1088 = vpop.f32.mrb[0].mxu0
        %v1089 = vadd.f32 %v973, %v1088
        %v1090 = vpop.f32.mrb[0].mxu0
        %1091 = vmatprep.mubr.bf16.mxu0 0
        %1092 = vmatmul.mubr.bf16.gmra.mrb[0].mxu0 %v1007
        %v1093 = vpop.f32.mrb[0].mxu0
        %v1094 = vadd.f32 %v973, %v1093
        %v1095 = vpop.f32.mrb[0].mxu0
        %v1096 = vpop.f32.mrb[0].mxu0
        %v1097 = vadd.f32 %v973, %v1096
        %v1098 = vpop.f32.mrb[0].mxu0
        %1099 = vmatprep.mubr.bf16.mxu0 0
        %1100 = vmatmul.mubr.bf16.gmra.mrb[0].mxu0 %v1010
        %v1101 = vpop.f32.mrb[0].mxu0
        %v1102 = vadd.f32 %v973, %v1101
        %v1103 = vpop.f32.mrb[0].mxu0
        %v1104 = vpop.f32.mrb[0].mxu0
        %v1105 = vadd.f32 %v973, %v1104
        %v1106 = vpop.f32.mrb[0].mxu0
        %1107 = vmatprep.mubr.bf16.mxu0 0
        %1108 = vmatmul.mubr.bf16.gmra.mrb[0].mxu0 %v1013
        %v1109 = vpop.f32.mrb[0].mxu0
        %v1110 = vadd.f32 %v973, %v1109
        %v1111 = vpop.f32.mrb[0].mxu0
        %v1112 = vpop.f32.mrb[0].mxu0
        %v1113 = vadd.f32 %v973, %v1112
        %v1114 = vpop.f32.mrb[0].mxu0
        %1115 = vdwg.mxu0
        %vm1116 = vcmp.ge.f32.partialorder %v1054, 0.0
        %vm1117 = vcmp.ge.f32.partialorder %v1057, 0.0
        %vm1118 = vcmp.ge.f32.partialorder %v1062, 0.0
        %vm1119 = vcmp.ge.f32.partialorder %v1065, 0.0
        %vm1120 = vcmp.ge.f32.partialorder %v1070, 0.0
        %vm1121 = vcmp.ge.f32.partialorder %v1073, 0.0
        %vm1122 = vcmp.ge.f32.partialorder %v1078, 0.0
        %vm1123 = vcmp.ge.f32.partialorder %v1081, 0.0
        %vm1124 = vcmp.ge.f32.partialorder %v1086, 0.0
        %vm1125 = vcmp.ge.f32.partialorder %v1089, 0.0
        %vm1126 = vcmp.ge.f32.partialorder %v1094, 0.0
        %vm1127 = vcmp.ge.f32.partialorder %v1097, 0.0
        %vm1128 = vcmp.ge.f32.partialorder %v1102, 0.0
        %vm1129 = vcmp.ge.f32.partialorder %v1105, 0.0
        %vm1130 = vcmp.ge.f32.partialorder %v1110, 0.0
        %vm1131 = vcmp.ge.f32.partialorder %v1113, 0.0
        %v1132 = vmul.f32 %v1054, 0.01
        %v1133 = vmul.f32 %v1057, 0.01
        %v1134 = vmul.f32 %v1062, 0.01
        %v1135 = vmul.f32 %v1065, 0.01
        %v1136 = vmul.f32 %v1070, 0.01
        %v1137 = vmul.f32 %v1073, 0.01
        %v1138 = vmul.f32 %v1078, 0.01
        %v1139 = vmul.f32 %v1081, 0.01
        %v1140 = vmul.f32 %v1086, 0.01
        %v1141 = vmul.f32 %v1089, 0.01
        %v1142 = vmul.f32 %v1094, 0.01
        %v1143 = vmul.f32 %v1097, 0.01
        %v1144 = vmul.f32 %v1102, 0.01
        %v1145 = vmul.f32 %v1105, 0.01
        %v1146 = vmul.f32 %v1110, 0.01
        %v1147 = vmul.f32 %v1113, 0.01
        %v1148 = vsel %vm1116, %v1054, %v1132
        %v1149 = vsel %vm1117, %v1057, %v1133
        %v1150 = vsel %vm1118, %v1062, %v1134
        %v1151 = vsel %vm1119, %v1065, %v1135
        %v1152 = vsel %vm1120, %v1070, %v1136
        %v1153 = vsel %vm1121, %v1073, %v1137
        %v1154 = vsel %vm1122, %v1078, %v1138
        %v1155 = vsel %vm1123, %v1081, %v1139
        %v1156 = vsel %vm1124, %v1086, %v1140
        %v1157 = vsel %vm1125, %v1089, %v1141
        %v1158 = vsel %vm1126, %v1094, %v1142
        %v1159 = vsel %vm1127, %v1097, %v1143
        %v1160 = vsel %vm1128, %v1102, %v1144
        %v1161 = vsel %vm1129, %v1105, %v1145
        %v1162 = vsel %vm1130, %v1110, %v1146
        %v1163 = vsel %vm1131, %v1113, %v1147
        %v1164 = vpack.c.bf16 %v1149, %v1148
        %v1165 = vpack.c.bf16 %v1151, %v1150
        %v1166 = vpack.c.bf16 %v1153, %v1152
        %v1167 = vpack.c.bf16 %v1155, %v1154
        %v1168 = vpack.c.bf16 %v1157, %v1156
        %v1169 = vpack.c.bf16 %v1159, %v1158
        %v1170 = vpack.c.bf16 %v1161, %v1160
        %v1171 = vpack.c.bf16 %v1163, %v1162
        %v1172 = vld [vmem:[%s3] sm:$0xf]
        %v1173 = vld [vmem:[%s4] sm:$0x1]
        %v1175 = vlaneseq
        %v1176 = vshrl.u32 %v1175, 7
        %v1177 = vsub.s32 0, %v1176
        %v1178 = vrot.slane %v1173, %v1177
        %v1181 = vsel %vm836, %v1164, 0
        %v1184 = vsel %vm836, %v1165, 0
        %v1187 = vsel %vm836, %v1166, 0
        %v1190 = vsel %vm836, %v1167, 0
        %v1193 = vsel %vm836, %v1168, 0
        %v1196 = vsel %vm836, %v1169, 0
        %v1199 = vsel %vm836, %v1170, 0
        %v1202 = vsel %vm836, %v1171, 0
        %vm1204 = vcmask 1043456
        %v1206 = vsel %vm1204, %v1172, 0
        %1208 = vmatprep.subr.bf16.mxu0 0
        %1209 = vmatpush1.bf16.msra.mxu0 %v1206
        %1210 = vmatprep.subr.bf16.mxu0 0
        %1211 = vmatpush1.bf16.msra.mxu0 0
        %1212 = vmatprep.subr.bf16.mxu0 0
        %1213 = vmatpush1.bf16.msra.mxu0 0
        %1214 = vmatprep.subr.bf16.mxu0 0
        %1215 = vmatpush1.bf16.msra.mxu0 0
        %1216 = vmatprep.subr.bf16.mxu0 0
        %1217 = vmatpush1.bf16.msra.mxu0 0
        %1218 = vmatprep.subr.bf16.mxu0 0
        %1219 = vmatpush1.bf16.msra.mxu0 0
        %1220 = vmatprep.subr.bf16.mxu0 0
        %1221 = vmatpush1.bf16.msra.mxu0 0
        %1222 = vmatprep.subr.bf16.mxu0 0
        %1223 = vmatpush1.bf16.msra.mxu0 0
        %1224 = vmatprep.subr.bf16.mxu0 0
        %1225 = vmatpush1.bf16.msra.mxu0 0
        %1226 = vmatprep.subr.bf16.mxu0 0
        %1227 = vmatpush1.bf16.msra.mxu0 0
        %1228 = vmatprep.subr.bf16.mxu0 0
        %1229 = vmatpush1.bf16.msra.mxu0 0
        %1230 = vmatprep.subr.bf16.mxu0 0
        %1231 = vmatpush1.bf16.msra.mxu0 0
        %1232 = vmatprep.subr.bf16.mxu0 0
        %1233 = vmatpush1.bf16.msra.mxu0 0
        %1234 = vmatprep.subr.bf16.mxu0 0
        %1235 = vmatpush1.bf16.msra.mxu0 0
        %1236 = vmatprep.subr.bf16.mxu0 0
        %1237 = vmatpush1.bf16.msra.mxu0 0
        %1238 = vmatprep.subr.bf16.mxu0 0
        %1239 = vmatpush1.bf16.msra.mxu0 0
        %1240 = vmatprep.mubr.bf16.mxu0 0
        %1241 = vmatmul.mubr.bf16.gmra.mrb[0].mxu0 %v1181
        %v1242 = vpop.f32.mrb[0].mxu0
        %v1243 = vadd.f32 %v1178, %v1242
        %v1244 = vpop.f32.mrb[0].mxu0
        %v1245 = vpop.f32.mrb[0].mxu0
        %v1246 = vadd.f32 %v1178, %v1245
        %v1247 = vpop.f32.mrb[0].mxu0
        %1248 = vmatprep.mubr.bf16.mxu0 0
        %1249 = vmatmul.mubr.bf16.gmra.mrb[0].mxu0 %v1184
        %v1250 = vpop.f32.mrb[0].mxu0
        %v1251 = vadd.f32 %v1178, %v1250
        %v1252 = vpop.f32.mrb[0].mxu0
        %v1253 = vpop.f32.mrb[0].mxu0
        %v1254 = vadd.f32 %v1178, %v1253
        %v1255 = vpop.f32.mrb[0].mxu0
        %1256 = vmatprep.mubr.bf16.mxu0 0
        %1257 = vmatmul.mubr.bf16.gmra.mrb[0].mxu0 %v1187
        %v1258 = vpop.f32.mrb[0].mxu0
        %v1259 = vadd.f32 %v1178, %v1258
        %v1260 = vpop.f32.mrb[0].mxu0
        %v1261 = vpop.f32.mrb[0].mxu0
        %v1262 = vadd.f32 %v1178, %v1261
        %v1263 = vpop.f32.mrb[0].mxu0
        %1264 = vmatprep.mubr.bf16.mxu0 0
        %1265 = vmatmul.mubr.bf16.gmra.mrb[0].mxu0 %v1190
        %v1266 = vpop.f32.mrb[0].mxu0
        %v1267 = vadd.f32 %v1178, %v1266
        %v1268 = vpop.f32.mrb[0].mxu0
        %v1269 = vpop.f32.mrb[0].mxu0
        %v1270 = vadd.f32 %v1178, %v1269
        %v1271 = vpop.f32.mrb[0].mxu0
        %1272 = vmatprep.mubr.bf16.mxu0 0
        %1273 = vmatmul.mubr.bf16.gmra.mrb[0].mxu0 %v1193
        %v1274 = vpop.f32.mrb[0].mxu0
        %v1275 = vadd.f32 %v1178, %v1274
        %v1276 = vpop.f32.mrb[0].mxu0
        %v1277 = vpop.f32.mrb[0].mxu0
        %v1278 = vadd.f32 %v1178, %v1277
        %v1279 = vpop.f32.mrb[0].mxu0
        %1280 = vmatprep.mubr.bf16.mxu0 0
        %1281 = vmatmul.mubr.bf16.gmra.mrb[0].mxu0 %v1196
        %v1282 = vpop.f32.mrb[0].mxu0
        %v1283 = vadd.f32 %v1178, %v1282
        %v1284 = vpop.f32.mrb[0].mxu0
        %v1285 = vpop.f32.mrb[0].mxu0
        %v1286 = vadd.f32 %v1178, %v1285
        %v1287 = vpop.f32.mrb[0].mxu0
        %1288 = vmatprep.mubr.bf16.mxu0 0
        %1289 = vmatmul.mubr.bf16.gmra.mrb[0].mxu0 %v1199
        %v1290 = vpop.f32.mrb[0].mxu0
        %v1291 = vadd.f32 %v1178, %v1290
        %v1292 = vpop.f32.mrb[0].mxu0
        %v1293 = vpop.f32.mrb[0].mxu0
        %v1294 = vadd.f32 %v1178, %v1293
        %v1295 = vpop.f32.mrb[0].mxu0
        %1296 = vmatprep.mubr.bf16.mxu0 0
        %1297 = vmatmul.mubr.bf16.gmra.mrb[0].mxu0 %v1202
        %v1298 = vpop.f32.mrb[0].mxu0
        %v1299 = vadd.f32 %v1178, %v1298
        %v1300 = vpop.f32.mrb[0].mxu0
        %v1301 = vpop.f32.mrb[0].mxu0
        %v1302 = vadd.f32 %v1178, %v1301
        %v1303 = vpop.f32.mrb[0].mxu0
        %1304 = vdwg.mxu0
        %1305 = vst [vmem:[%s231] sm:$0xff] %v1243
        %1306 = vst [vmem:[%s231 + $0x8] sm:$0xff] %v1246
        %1307 = vst [vmem:[%s231 + $0x10] sm:$0xff] %v1251
        %1308 = vst [vmem:[%s231 + $0x18] sm:$0xff] %v1254
        %1309 = vst [vmem:[%s231 + $0x20] sm:$0xff] %v1259
        %1310 = vst [vmem:[%s231 + $0x28] sm:$0xff] %v1262
        %1311 = vst [vmem:[%s231 + $0x30] sm:$0xff] %v1267
        %1312 = vst [vmem:[%s231 + $0x38] sm:$0xff] %v1270
        %1313 = vst [vmem:[%s231 + $0x40] sm:$0xff] %v1275
        %1314 = vst [vmem:[%s231 + $0x48] sm:$0xff] %v1278
        %1315 = vst [vmem:[%s231 + $0x50] sm:$0xff] %v1283
        %1316 = vst [vmem:[%s231 + $0x58] sm:$0xff] %v1286
        %1317 = vst [vmem:[%s231 + $0x60] sm:$0xff] %v1291
        %1318 = vst [vmem:[%s231 + $0x68] sm:$0xff] %v1294
        %1319 = vst [vmem:[%s231 + $0x70] sm:$0xff] %v1299
        %1320 = vst [vmem:[%s231 + $0x78] sm:$0xff] %v1302
        %s1321 = sand.u32 %s151, 1
        %s1322 = scalar_lea.sflag [#allocation3], %s1321
        %s1323 = sand.u32 %s151, 1
        %s1324 = smul.addr %s1323, 128
        %s1325 = scalar_lea.vmem [#allocation2], %s1324
        // Predicated region
        $region41: #{tpu_custom_call.1} parent=39 // pred_check
          %p1326 = pneg %p161
        $region42: #{tpu_custom_call.1} parent=39 // pred_check_branch
          %1328 = sbr.rel (%p1326) target = $region44
        $region43: #{tpu_custom_call.1} parent=39 // pred_region
          %s1329 = smul.u32 8, %s24
          %s1331 = ssub.s32 2048, 2048
          %1332 = vsyncadd %s1322, %s1331
          %s1333 = smul.addr %s1329, 2
          %s1334 = smul.addr %s23, 32
          %s1335 = sadd.s32 %s1333, %s1334
          %s1336 = smul.addr %s1335, 128
          %s1337 = scalar_lea.hbm %s5, %s1336
          %s1338 = sshll.u32 %s1325, 4
          %s1339 = int_to_ptr.vmem [resolvable:$true] %s1338
          %1344 = dma.vmem_to_hbm [thread:$0]  %s1339, 2048, %s1337, %s1322, 128, 128, 8
        $region44: #{tpu_custom_call.1} parent=39 // pred_fallthru
          _
      $region40: #{tpu_custom_call.1} parent=5 // pred_fallthru
        _
      %p1345 = scmp.le.s32.totalorder 2, %s14
      // Predicated region
      $region45: #{tpu_custom_call.1} parent=5 // pred_check
        %p1346 = pneg %p1345
      $region46: #{tpu_custom_call.1} parent=5 // pred_check_branch
        %1348 = sbr.rel (%p1346) target = $region48
      $region47: #{tpu_custom_call.1} parent=5 // pred_region
        %s1349 = ssub.s32 %s14, 2
        // Predicated region
        $region49: #{tpu_custom_call.1} parent=47 // pred_check
          %p1350 = pneg %p167
        $region50: #{tpu_custom_call.1} parent=47 // pred_check_branch
          %1352 = sbr.rel (%p1350) target = $region52
        $region51: #{tpu_custom_call.1} parent=47 // pred_region
          %s1353 = sand.u32 %s152, 1
          %s1354 = scalar_lea.sflag [#allocation3], %s1353
          %s1355 = sand.u32 %s152, 1
          %s1356 = smul.addr %s1355, 128
          %s1357 = scalar_lea.vmem [#allocation2], %s1356
          %1358 = dma.done %s1354, 2048
        $region52: #{tpu_custom_call.1} parent=47 // pred_fallthru
          _
      $region48: #{tpu_custom_call.1} parent=5 // pred_fallthru
        _
    $region6: #{tpu_custom_call.1} parent=1 // loop_footer
      %s18 = sadd.s32 1, %s14
    $region7: #{tpu_custom_call.1} parent=1 // loop_footer_branch
      %13 = sbr.rel target = $region3
    $region8: #{tpu_custom_call.1} parent=1 // loop_exit
      _
    %1359 = vsyncpa [#allocation3], 1
    %s1360 = scalar_lea.sflag [#allocation3], 1
    %1361 = vsyncpa %s1360, 1

</llo_original>
